<compile_context>
chip_gen: v7x
topology: tpu7x:2x2x1
jax: 0.10.0
libtpu: 0.0.40
codegen_flags: <defaults>
</compile_context>

<pallas_src>
import functools

import numpy as np
import jax
import jax.numpy as jnp
from jax import lax
from jax.experimental import pallas as pl
from jax.experimental.pallas import tpu as pltpu

# ---------------------------------------------------------------------------
# Problem configuration (small, consistent with the module's __init__)
# ---------------------------------------------------------------------------
# in_irreps  = "4x0e + 2x1o"  -> dim 10, scalar dim 4
# sh_irreps  = "1x0e + 1x1o"  -> dim 4
# out_irreps = "4x0e + 2x1o"  -> dim 10, scalar dim 4
IN_IRREPS  = [(4, 0, +1), (2, 1, -1)]   # (mul, l, parity)
SH_IRREPS  = [(1, 0, +1), (1, 1, -1)]
OUT_IRREPS = [(4, 0, +1), (2, 1, -1)]

T = 8                 # num_timesteps
N = 8                 # nodes
E = 16                # edges
N_EDGE_FEATURES = 16
NUM_MODES = 2

BATCH_NORM = True
RESIDUAL = False      # module default
DROPOUT = 0.0         # module default (dropout==0 -> no-op)

LANE_PAD = 128        # lane-dense output slab width


def _irreps_dim(irreps):
    return sum(mul * (2 * l + 1) for mul, l, _ in irreps)


def _scalar_dim(irreps):
    return sum(mul for mul, l, _ in irreps if l == 0)


IN_DIM = _irreps_dim(IN_IRREPS)
SH_DIM = _irreps_dim(SH_IRREPS)
OUT_DIM = _irreps_dim(OUT_IRREPS)
SCALAR_IN_DIM = _scalar_dim(IN_IRREPS)
SCALAR_OUT_DIM = _scalar_dim(OUT_IRREPS)


# ---------------------------------------------------------------------------
# Fully connected tensor product basis (e3nn-style, built once on the host).
# TODO(synk): exact e3nn irrep/path normalization constants are approximated
#             (component normalization + 1/sqrt(fan_in) path normalization).
# ---------------------------------------------------------------------------
def _cg(l1, l2, lo):
    if (l1, l2, lo) == (0, 0, 0):
        c = np.zeros((1, 1, 1)); c[0, 0, 0] = 1.0; return c
    if (l1, l2, lo) == (0, 1, 1):
        c = np.zeros((1, 3, 3)); c[0] = np.eye(3); return c
    if (l1, l2, lo) == (1, 0, 1):
        c = np.zeros((3, 1, 3)); c[:, 0, :] = np.eye(3); return c
    if (l1, l2, lo) == (1, 1, 0):
        c = np.zeros((3, 3, 1)); c[:, :, 0] = np.eye(3) / np.sqrt(3.0); return c
    if (l1, l2, lo) == (1, 1, 1):
        eps = np.zeros((3, 3, 3))
        for a, b, cc in [(0, 1, 2), (1, 2, 0), (2, 0, 1)]:
            eps[a, b, cc] = 1.0
            eps[b, a, cc] = -1.0
        return eps / np.sqrt(2.0)
    return None


def build_tp_basis(in_irreps, sh_irreps, out_irreps):
    def offsets(irreps):
        offs, d = [], 0
        for mul, l, _ in irreps:
            offs.append(d)
            d += mul * (2 * l + 1)
        return offs, d

    in_off, I = offsets(in_irreps)
    sh_off, J = offsets(sh_irreps)
    out_off, O = offsets(out_irreps)

    paths = []
    for i1, (m1, l1, p1) in enumerate(in_irreps):
        for i2, (m2, l2, p2) in enumerate(sh_irreps):
            for io, (mo, lo, po) in enumerate(out_irreps):
                if abs(l1 - l2) <= lo <= l1 + l2 and p1 * p2 == po:
                    C = _cg(l1, l2, lo)
                    if C is not None:
                        paths.append((i1, i2, io, C))

    fan_in = {}
    for i1, i2, io, _ in paths:
        fan_in[io] = fan_in.get(io, 0) + in_irreps[i1][0] * sh_irreps[i2][0]

    P = sum(in_irreps[i1][0] * sh_irreps[i2][0] * out_irreps[io][0]
            for i1, i2, io, _ in paths)

    B = np.zeros((P, I, J, O), dtype=np.float32)
    p = 0
    for i1, i2, io, C in paths:
        m1, l1, _ = in_irreps[i1]
        m2, l2, _ = sh_irreps[i2]
        mo, lo, _ = out_irreps[io]
        d1, d2, do = 2 * l1 + 1, 2 * l2 + 1, 2 * lo + 1
        alpha = 1.0 / np.sqrt(fan_in[io])
        for u in range(m1):
            for v in range(m2):
                for w in range(mo):
                    i0 = in_off[i1] + u * d1
                    j0 = sh_off[i2] + v * d2
                    o0 = out_off[io] + w * do
                    B[p, i0:i0 + d1, j0:j0 + d2, o0:o0 + do] = alpha * C
                    p += 1
    return B, P, I, J, O


_B, WEIGHT_NUMEL, _I, _J, _O = build_tp_basis(IN_IRREPS, SH_IRREPS, OUT_IRREPS)
assert (_I, _J, _O) == (IN_DIM, SH_DIM, OUT_DIM)


# ---------------------------------------------------------------------------
# Fused Pallas kernel: edge-MLP -> gather -> tensor product -> scatter-mean
#                      -> spectral add -> BatchNorm, all VMEM-resident.
# Row layouts: edge slab rows = t*E + e  (T*E = 128), node slab rows = t*N + n.
# ---------------------------------------------------------------------------
def fused_kernel(ea_ref, w1_ref, b1_ref, w2e_ref, b2e_ref,
                 x_ref, sh_ref, oh_src_ref, oh_dst_ref, inv_deg_ref,
                 expand_i_ref, tile_j_ref, basis_ref, collapse_ref,
                 spec_ref, gamma_ref, beta_ref,
                 out_ref, *, apply_bn):
    f32 = jnp.float32
    bf16 = jnp.bfloat16

    # ---- edge MLP: Linear -> ReLU -> Linear.  The second layer's weight matrix is
    #      pre-expanded over the output-irrep axis, so this matmul directly emits
    #      w_exp[e, p*O + o] = w[e, p]   (no expand_p broadcast matmul needed).
    h = jnp.dot(ea_ref[...], w1_ref[...], preferred_element_type=f32)
    h = jnp.maximum(h + b1_ref[...], 0.0)
    w_exp = jnp.dot(h.astype(bf16), w2e_ref[...],
                    preferred_element_type=f32) + b2e_ref[...]          # (T*E, P*O)

    # ---- gather x[t, src[e]] via a precomputed block-diagonal one-hot matmul
    x1 = jnp.dot(oh_src_ref[...], x_ref[...], preferred_element_type=f32)  # (T*E, I)

    # ---- outer product: outer[e, i*J + j] = x1[e, i] * sh[e, j]
    outer = (jnp.dot(x1.astype(bf16), expand_i_ref[...], preferred_element_type=f32) *
             jnp.dot(sh_ref[...], tile_j_ref[...], preferred_element_type=f32))

    # ---- basis contraction: z[e, p*O + o] = sum_{ij} outer[e, ij] * B[ij, p, o]
    z = jnp.dot(outer.astype(bf16), basis_ref[...], preferred_element_type=f32)

    # ---- per-edge weights + collapse over p.  The collapse matrix is zero-padded
    #      to 128 output lanes so every downstream op/store is lane-dense.
    tp = jnp.dot((w_exp * z).astype(bf16), collapse_ref[...],
                 preferred_element_type=f32)                             # (T*E, 128)

    # ---- scatter-mean over destination nodes (block-diagonal one-hot matmul,
    #      precomputed inverse in-degree; zero in-degree -> 0, as torch_scatter)
    nodes = jnp.dot(oh_dst_ref[...], tp.astype(bf16),
                    preferred_element_type=f32)                          # (T*N, 128)
    nodes = nodes * inv_deg_ref[...]

    # ---- add spectral-conv output onto the scalar channels (pre-padded to 128 lanes)
    nodes = nodes + spec_ref[...]

    # ---- BatchNorm1d (training mode, biased variance), per channel over T*N rows.
    if apply_bn:
        mean = jnp.mean(nodes, axis=0, keepdims=True)
        var = jnp.mean((nodes - mean) ** 2, axis=0, keepdims=True)
        nodes = (nodes - mean) * lax.rsqrt(var + 1e-5) * gamma_ref[...] + beta_ref[...]

    out_ref[...] = nodes                                                 # lane-dense store


# ---------------------------------------------------------------------------
# Parameter initialization (deterministic stand-in for default_init())
# ---------------------------------------------------------------------------
def init_params(key):
    ks = jax.random.split(key, 6)
    F = N_EDGE_FEATURES
    P = WEIGHT_NUMEL
    O = OUT_DIM
    I, J = IN_DIM, SH_DIM

    w1 = jax.random.normal(ks[0], (F, F), jnp.float32) / np.sqrt(F)
    b1 = 0.01 * jax.random.normal(ks[1], (1, F), jnp.float32)
    w2 = jax.random.normal(ks[2], (F, P), jnp.float32) / np.sqrt(F)
    b2 = 0.01 * jax.random.normal(ks[3], (1, P), jnp.float32)

    # Pre-expand the second edge-MLP layer over the output axis:
    #   w2_exp[f, p*O + o] = w2[f, p],  b2_exp[0, p*O + o] = b2[0, p]
    w2_exp = jnp.repeat(w2, O, axis=1)          # (F, P*O)
    b2_exp = jnp.repeat(b2, O, axis=1)          # (1, P*O)

    scale = 1.0 / (SCALAR_IN_DIM * SCALAR_OUT_DIM)
    spec_re = jax.random.uniform(ks[4], (SCALAR_IN_DIM, SCALAR_OUT_DIM, NUM_MODES))
    spec_im = jax.random.uniform(ks[5], (SCALAR_IN_DIM, SCALAR_OUT_DIM, NUM_MODES))
    spec_w = (scale * (spec_re + 1j * spec_im)).astype(jnp.complex64)

    basis2 = jnp.asarray(_B.transpose(1, 2, 0, 3).reshape(I * J, P * O))            # (I*J, P*O)
    expand_i = jnp.asarray(np.repeat(np.eye(I, dtype=np.float32), J, axis=1))       # (I, I*J)
    tile_j = jnp.asarray(np.tile(np.eye(J, dtype=np.float32), (1, I)))              # (J, I*J)

    collapse_pad = np.zeros((P * O, LANE_PAD), np.float32)                          # (P*O, 128)
    collapse_pad[:, :O] = np.tile(np.eye(O, dtype=np.float32), (P, 1))
    collapse_pad = jnp.asarray(collapse_pad)

    bn_gamma_pad = jnp.ones((1, LANE_PAD), jnp.float32)
    bn_beta_pad = jnp.zeros((1, LANE_PAD), jnp.float32)

    return dict(w1=w1, b1=b1, w2_exp=w2_exp, b2_exp=b2_exp, spec_w=spec_w,
                basis2=basis2, expand_i=expand_i, tile_j=tile_j,
                collapse_pad=collapse_pad,
                bn_gamma_pad=bn_gamma_pad, bn_beta_pad=bn_beta_pad)


# ---------------------------------------------------------------------------
# Forward pass
# ---------------------------------------------------------------------------
def time_equiv_conv_forward(params, x, edge_index, edge_attr, edge_sh):
    if edge_index.shape[1] == 0:          # static shape check, same as the module
        return jnp.zeros_like(x)

    t_dim, n_nodes, _ = x.shape
    n_edges = edge_index.shape[1]
    TN = t_dim * n_nodes
    TE = t_dim * n_edges
    bf16 = jnp.bfloat16

    # ---- SpectralConv1d on scalar channels (plain JAX; FFT has no Pallas equivalent)
    # TODO(synk): rfft/irfft stay in XLA; only the tiny spectral mix lives here.
    x_scalar = x[:, :, :SCALAR_IN_DIM].astype(jnp.float32)
    x_ft = jnp.fft.rfft(x_scalar, axis=0)
    out_ft = jnp.zeros((t_dim // 2 + 1, n_nodes, SCALAR_OUT_DIM), dtype=jnp.complex64)
    out_ft = out_ft.at[:NUM_MODES].set(
        jnp.einsum('tni,iom->tno', x_ft[:NUM_MODES], params['spec_w']))
    x_scalar_conv = jnp.fft.irfft(out_ft, n=t_dim, axis=0).astype(jnp.float32)
    spec_pad = jnp.pad(x_scalar_conv.reshape(TN, SCALAR_OUT_DIM),
                       ((0, 0), (0, LANE_PAD - SCALAR_OUT_DIM)))         # (T*N, 128)

    # ---- time-folded block-diagonal one-hot gather/scatter operators + inverse degree
    #      (src/dst are time-invariant; built once as cheap XLA ops, exact in bf16)
    src = edge_index[0].astype(jnp.int32)
    dst = edge_index[1].astype(jnp.int32)
    t_e = jnp.repeat(jnp.arange(t_dim, dtype=jnp.int32), n_edges)        # (T*E,)
    src_flat = t_e * n_nodes + jnp.tile(src, t_dim)
    dst_flat = t_e * n_nodes + jnp.tile(dst, t_dim)
    node_ids = jnp.arange(TN, dtype=jnp.int32)
    oh_src = (src_flat[:, None] == node_ids[None, :]).astype(bf16)       # (T*E, T*N)
    oh_dst = (node_ids[:, None] == dst_flat[None, :]).astype(bf16)       # (T*N, T*E)
    deg = jnp.zeros((n_nodes,), jnp.float32).at[dst].add(1.0)
    inv_deg_tn = jnp.tile(1.0 / jnp.maximum(deg, 1.0), t_dim)[:, None]   # (T*N, 1)

    # ---- single fused kernel (no grid: whole <1 MiB working set resident in VMEM)
    out_pad = pl.pallas_call(
        functools.partial(fused_kernel, apply_bn=BATCH_NORM),
        out_shape=jax.ShapeDtypeStruct((TN, LANE_PAD), jnp.float32),
        compiler_params=pltpu.CompilerParams(vmem_limit_bytes=32 * 1024 * 1024),
    )(
        edge_attr.reshape(TE, N_EDGE_FEATURES).astype(bf16),
        params['w1'].astype(bf16), params['b1'],
        params['w2_exp'].astype(bf16), params['b2_exp'],
        x.reshape(TN, IN_DIM).astype(bf16),
        edge_sh.reshape(TE, SH_DIM).astype(bf16),
        oh_src, oh_dst, inv_deg_tn,
        params['expand_i'].astype(bf16),
        params['tile_j'].astype(bf16),
        params['basis2'].astype(bf16),
        params['collapse_pad'].astype(bf16),
        spec_pad, params['bn_gamma_pad'], params['bn_beta_pad'],
    )

    x_out = out_pad[:, :OUT_DIM].reshape(t_dim, n_nodes, OUT_DIM)

    # dropout = 0.0 (module default): no-op
    if RESIDUAL and IN_IRREPS == OUT_IRREPS:
        x_out = x_out + x
    return x_out


# ---------------------------------------------------------------------------
# Driver
# ---------------------------------------------------------------------------
if __name__ == "__main__":
    key = jax.random.PRNGKey(0)
    k = jax.random.split(key, 6)

    x = jax.random.normal(k[0], (T, N, IN_DIM), jnp.float32)
    edge_index = jax.random.randint(k[1], (2, E), 0, N, dtype=jnp.int32)
    edge_attr = jax.random.normal(k[2], (T, E, N_EDGE_FEATURES), jnp.float32)
    dirs = jax.random.normal(k[3], (T, E, 3), jnp.float32)
    dirs = dirs / jnp.linalg.norm(dirs, axis=-1, keepdims=True)
    # spherical harmonics l=0 (constant 1) and l=1 (sqrt(3) * unit direction)
    edge_sh = jnp.concatenate(
        [jnp.ones((T, E, 1), jnp.float32), jnp.sqrt(3.0) * dirs], axis=-1)

    params = init_params(k[4])

    fwd = jax.jit(functools.partial(time_equiv_conv_forward, params))
    out = fwd(x, edge_index, edge_attr, edge_sh)
    out = jax.block_until_ready(out)

    assert out.shape == (T, N, OUT_DIM), out.shape
    assert bool(jnp.all(jnp.isfinite(out)))
    print("KERNEL_OK")
</pallas_src>

<mosaic_0001>
module attributes {stable_mosaic.version = 11 : i64} {
  func.func private @main(%arg0: i32) attributes {dimension_semantics = [#tpu.dimension_semantics<core_parallel>], iteration_bounds = array<i64: 2>, tpu.core_type = #tpu.core_type<sc_scalar_subcore>, window_params = []} {
    return
  }
}

module attributes {stable_mosaic.version = 11 : i64} {
  func.func private @main(%arg0: i32) attributes {dimension_semantics = [#tpu.dimension_semantics<core_parallel>], iteration_bounds = array<i64: 2>, tpu.core_type = #tpu.core_type<sc_scalar_subcore>, window_params = []} {
    return
  }
}

module attributes {stable_mosaic.version = 11 : i64} {
  func.func @fused_kernel(%arg0: memref<128x16xbf16, #tpu.memory_space<vmem>>, %arg1: memref<16x16xbf16, #tpu.memory_space<vmem>>, %arg2: memref<1x16xf32, #tpu.memory_space<vmem>>, %arg3: memref<16x360xbf16, #tpu.memory_space<vmem>>, %arg4: memref<1x360xf32, #tpu.memory_space<vmem>>, %arg5: memref<64x10xbf16, #tpu.memory_space<vmem>>, %arg6: memref<128x4xbf16, #tpu.memory_space<vmem>>, %arg7: memref<128x64xbf16, #tpu.memory_space<vmem>>, %arg8: memref<64x128xbf16, #tpu.memory_space<vmem>>, %arg9: memref<64x1xf32, #tpu.memory_space<vmem>>, %arg10: memref<10x40xbf16, #tpu.memory_space<vmem>>, %arg11: memref<4x40xbf16, #tpu.memory_space<vmem>>, %arg12: memref<40x360xbf16, #tpu.memory_space<vmem>>, %arg13: memref<360x128xbf16, #tpu.memory_space<vmem>>, %arg14: memref<64x128xf32, #tpu.memory_space<vmem>>, %arg15: memref<1x128xf32, #tpu.memory_space<vmem>>, %arg16: memref<1x128xf32, #tpu.memory_space<vmem>>, %arg17: memref<64x128xf32, #tpu.memory_space<vmem>>) attributes {dimension_semantics = [], scalar_prefetch = 0 : i64, scratch_operands = 0 : i64, tpu.core_type = #tpu.core_type<tc>} {
    %c0 = arith.constant 0 : index
    %c0_0 = arith.constant 0 : index
    %0 = vector.load %arg0[%c0, %c0_0] : memref<128x16xbf16, #tpu.memory_space<vmem>>, vector<128x16xbf16>
    %c0_1 = arith.constant 0 : index
    %c0_2 = arith.constant 0 : index
    %1 = vector.load %arg1[%c0_1, %c0_2] : memref<16x16xbf16, #tpu.memory_space<vmem>>, vector<16x16xbf16>
    %cst = arith.constant dense<0.000000e+00> : vector<128x16xf32>
    %2 = tpu.matmul %0, %1, %cst {dimension_numbers = #tpu.dot_dimension_numbers<[1], [0], [0], [1], [0, 0, 1, 1], [], []>} : vector<128x16xbf16>, vector<16x16xbf16>, vector<128x16xf32> -> vector<128x16xf32>
    %c0_3 = arith.constant 0 : index
    %c0_4 = arith.constant 0 : index
    %3 = vector.load %arg2[%c0_3, %c0_4] : memref<1x16xf32, #tpu.memory_space<vmem>>, vector<1x16xf32>
    %4 = vector.broadcast %3 : vector<1x16xf32> to vector<128x16xf32>
    %5 = arith.addf %2, %4 : vector<128x16xf32>
    %cst_5 = arith.constant 0.000000e+00 : f32
    %6 = vector.broadcast %cst_5 : f32 to vector<128x16xf32>
    %7 = arith.maximumf %5, %6 : vector<128x16xf32>
    %8 = arith.truncf %7 : vector<128x16xf32> to vector<128x16xbf16>
    %c0_6 = arith.constant 0 : index
    %c0_7 = arith.constant 0 : index
    %9 = vector.load %arg3[%c0_6, %c0_7] : memref<16x360xbf16, #tpu.memory_space<vmem>>, vector<16x360xbf16>
    %cst_8 = arith.constant dense<0.000000e+00> : vector<128x360xf32>
    %10 = tpu.matmul %8, %9, %cst_8 {dimension_numbers = #tpu.dot_dimension_numbers<[1], [0], [0], [1], [0, 0, 1, 1], [], []>} : vector<128x16xbf16>, vector<16x360xbf16>, vector<128x360xf32> -> vector<128x360xf32>
    %c0_9 = arith.constant 0 : index
    %c0_10 = arith.constant 0 : index
    %11 = vector.load %arg4[%c0_9, %c0_10] : memref<1x360xf32, #tpu.memory_space<vmem>>, vector<1x360xf32>
    %12 = vector.broadcast %11 : vector<1x360xf32> to vector<128x360xf32>
    %13 = arith.addf %10, %12 : vector<128x360xf32>
    %c0_11 = arith.constant 0 : index
    %c0_12 = arith.constant 0 : index
    %14 = vector.load %arg7[%c0_11, %c0_12] : memref<128x64xbf16, #tpu.memory_space<vmem>>, vector<128x64xbf16>
    %c0_13 = arith.constant 0 : index
    %c0_14 = arith.constant 0 : index
    %15 = vector.load %arg5[%c0_13, %c0_14] : memref<64x10xbf16, #tpu.memory_space<vmem>>, vector<64x10xbf16>
    %cst_15 = arith.constant dense<0.000000e+00> : vector<128x10xf32>
    %16 = tpu.matmul %14, %15, %cst_15 {dimension_numbers = #tpu.dot_dimension_numbers<[1], [0], [0], [1], [0, 0, 1, 1], [], []>} : vector<128x64xbf16>, vector<64x10xbf16>, vector<128x10xf32> -> vector<128x10xf32>
    %17 = arith.truncf %16 : vector<128x10xf32> to vector<128x10xbf16>
    %c0_16 = arith.constant 0 : index
    %c0_17 = arith.constant 0 : index
    %18 = vector.load %arg10[%c0_16, %c0_17] : memref<10x40xbf16, #tpu.memory_space<vmem>>, vector<10x40xbf16>
    %cst_18 = arith.constant dense<0.000000e+00> : vector<128x40xf32>
    %19 = tpu.matmul %17, %18, %cst_18 {dimension_numbers = #tpu.dot_dimension_numbers<[1], [0], [0], [1], [0, 0, 1, 1], [], []>} : vector<128x10xbf16>, vector<10x40xbf16>, vector<128x40xf32> -> vector<128x40xf32>
    %c0_19 = arith.constant 0 : index
    %c0_20 = arith.constant 0 : index
    %20 = vector.load %arg6[%c0_19, %c0_20] : memref<128x4xbf16, #tpu.memory_space<vmem>>, vector<128x4xbf16>
    %c0_21 = arith.constant 0 : index
    %c0_22 = arith.constant 0 : index
    %21 = vector.load %arg11[%c0_21, %c0_22] : memref<4x40xbf16, #tpu.memory_space<vmem>>, vector<4x40xbf16>
    %cst_23 = arith.constant dense<0.000000e+00> : vector<128x40xf32>
    %22 = tpu.matmul %20, %21, %cst_23 {dimension_numbers = #tpu.dot_dimension_numbers<[1], [0], [0], [1], [0, 0, 1, 1], [], []>} : vector<128x4xbf16>, vector<4x40xbf16>, vector<128x40xf32> -> vector<128x40xf32>
    %23 = arith.mulf %19, %22 : vector<128x40xf32>
    %24 = arith.truncf %23 : vector<128x40xf32> to vector<128x40xbf16>
    %c0_24 = arith.constant 0 : index
    %c0_25 = arith.constant 0 : index
    %25 = vector.load %arg12[%c0_24, %c0_25] : memref<40x360xbf16, #tpu.memory_space<vmem>>, vector<40x360xbf16>
    %cst_26 = arith.constant dense<0.000000e+00> : vector<128x360xf32>
    %26 = tpu.matmul %24, %25, %cst_26 {dimension_numbers = #tpu.dot_dimension_numbers<[1], [0], [0], [1], [0, 0, 1, 1], [], []>} : vector<128x40xbf16>, vector<40x360xbf16>, vector<128x360xf32> -> vector<128x360xf32>
    %27 = arith.mulf %13, %26 : vector<128x360xf32>
    %28 = arith.truncf %27 : vector<128x360xf32> to vector<128x360xbf16>
    %c0_27 = arith.constant 0 : index
    %c0_28 = arith.constant 0 : index
    %29 = vector.load %arg13[%c0_27, %c0_28] : memref<360x128xbf16, #tpu.memory_space<vmem>>, vector<360x128xbf16>
    %cst_29 = arith.constant dense<0.000000e+00> : vector<128x128xf32>
    %30 = tpu.matmul %28, %29, %cst_29 {dimension_numbers = #tpu.dot_dimension_numbers<[1], [0], [0], [1], [0, 0, 1, 1], [], []>} : vector<128x360xbf16>, vector<360x128xbf16>, vector<128x128xf32> -> vector<128x128xf32>
    %c0_30 = arith.constant 0 : index
    %c0_31 = arith.constant 0 : index
    %31 = vector.load %arg8[%c0_30, %c0_31] : memref<64x128xbf16, #tpu.memory_space<vmem>>, vector<64x128xbf16>
    %32 = arith.truncf %30 : vector<128x128xf32> to vector<128x128xbf16>
    %cst_32 = arith.constant dense<0.000000e+00> : vector<64x128xf32>
    %33 = tpu.matmul %31, %32, %cst_32 {dimension_numbers = #tpu.dot_dimension_numbers<[1], [0], [0], [1], [0, 0, 1, 1], [], []>} : vector<64x128xbf16>, vector<128x128xbf16>, vector<64x128xf32> -> vector<64x128xf32>
    %c0_33 = arith.constant 0 : index
    %c0_34 = arith.constant 0 : index
    %34 = vector.load %arg9[%c0_33, %c0_34] : memref<64x1xf32, #tpu.memory_space<vmem>>, vector<64x1xf32>
    %35 = vector.broadcast %34 : vector<64x1xf32> to vector<64x128xf32>
    %36 = arith.mulf %33, %35 : vector<64x128xf32>
    %c0_35 = arith.constant 0 : index
    %c0_36 = arith.constant 0 : index
    %37 = vector.load %arg14[%c0_35, %c0_36] : memref<64x128xf32, #tpu.memory_space<vmem>>, vector<64x128xf32>
    %38 = arith.addf %36, %37 : vector<64x128xf32>
    %cst_37 = arith.constant dense<0.000000e+00> : vector<128xf32>
    %39 = vector.multi_reduction <add>, %38, %cst_37 [0] : vector<64x128xf32> to vector<128xf32>
    %40 = vector.shape_cast %39 : vector<128xf32> to vector<1x128xf32>
    %cst_38 = arith.constant 6.400000e+01 : f32
    %41 = vector.broadcast %cst_38 : f32 to vector<1x128xf32>
    %42 = arith.divf %40, %41 : vector<1x128xf32>
    %43 = vector.broadcast %42 : vector<1x128xf32> to vector<64x128xf32>
    %44 = arith.subf %38, %43 : vector<64x128xf32>
    %45 = arith.mulf %44, %44 : vector<64x128xf32>
    %cst_39 = arith.constant dense<0.000000e+00> : vector<128xf32>
    %46 = vector.multi_reduction <add>, %45, %cst_39 [0] : vector<64x128xf32> to vector<128xf32>
    %47 = vector.shape_cast %46 : vector<128xf32> to vector<1x128xf32>
    %cst_40 = arith.constant 6.400000e+01 : f32
    %48 = vector.broadcast %cst_40 : f32 to vector<1x128xf32>
    %49 = arith.divf %47, %48 : vector<1x128xf32>
    %50 = vector.broadcast %42 : vector<1x128xf32> to vector<64x128xf32>
    %51 = arith.subf %38, %50 : vector<64x128xf32>
    %cst_41 = arith.constant 9.99999974E-6 : f32
    %52 = vector.broadcast %cst_41 : f32 to vector<1x128xf32>
    %53 = arith.addf %49, %52 : vector<1x128xf32>
    %54 = math.rsqrt %53 : vector<1x128xf32>
    %55 = vector.broadcast %54 : vector<1x128xf32> to vector<64x128xf32>
    %56 = arith.mulf %51, %55 : vector<64x128xf32>
    %c0_42 = arith.constant 0 : index
    %c0_43 = arith.constant 0 : index
    %57 = vector.load %arg15[%c0_42, %c0_43] : memref<1x128xf32, #tpu.memory_space<vmem>>, vector<1x128xf32>
    %58 = vector.broadcast %57 : vector<1x128xf32> to vector<64x128xf32>
    %59 = arith.mulf %56, %58 : vector<64x128xf32>
    %c0_44 = arith.constant 0 : index
    %c0_45 = arith.constant 0 : index
    %60 = vector.load %arg16[%c0_44, %c0_45] : memref<1x128xf32, #tpu.memory_space<vmem>>, vector<1x128xf32>
    %61 = vector.broadcast %60 : vector<1x128xf32> to vector<64x128xf32>
    %62 = arith.addf %59, %61 : vector<64x128xf32>
    %c0_46 = arith.constant 0 : index
    %c0_47 = arith.constant 0 : index
    %63 = vector.load %arg17[%c0_46, %c0_47] : memref<64x128xf32, #tpu.memory_space<vmem>>, vector<64x128xf32>
    tpu.vector_store %arg17[%c0_46, %c0_47], %62 {strides = array<i32>} : memref<64x128xf32, #tpu.memory_space<vmem>>, vector<64x128xf32>,
    return
  }
}

</mosaic_0001>

<llo_original>
// kernel: reverse.1
$region0: #{reverse.1}
  #allocation0 [shape = 's32[1]{0}', space=sflag, size = 0x4, scoped, tag = 'scoped memory for reverse.1']
  %s0 = inlined_call_operand.vmem [shape: f32[8,4,3], index: 0, kind: input, shape index: {}]
  %s1 = inlined_call_operand.vmem [shape: f32[8,4,3], index: 1, kind: output, shape index: {}]
  %s2 = scalar_lea.vmem %s0, 8
  %v3 = vld [vmem:[%s2] sm:$0xf]
  %4 = vst [vmem:[%s1] sm:$0xf] %v3
  %s5 = scalar_lea.vmem %s0, 4
  %v6 = vld [vmem:[%s5] sm:$0xf]
  %s7 = scalar_lea.vmem %s1, 4
  %8 = vst [vmem:[%s7] sm:$0xf] %v6
  %v9 = vld [vmem:[%s0] sm:$0xf]
  %s10 = scalar_lea.vmem %s1, 8
  %11 = vst [vmem:[%s10] sm:$0xf] %v9

// kernel: tile.24
$region0: #{tile.24}
  #allocation0 [shape = 's32[1]{0}', space=sflag, size = 0x4, scoped, tag = 'scoped memory for tile.24']
  %s0 = inlined_call_operand.vmem [shape: f32[8], index: 0, kind: input, shape index: {}]
  %s1 = inlined_call_operand.vmem [shape: f32[8,8], index: 1, kind: output, shape index: {}]
  // Predicated region
  $region2: #{tile.24} parent=0 // pred_check
    _
  $region3: #{tile.24} parent=0 // pred_check_branch
    %3 = sbr.rel (0) target = $region5
  $region4: #{tile.24} parent=0 // pred_region
    _
  $region5: #{tile.24} parent=0 // pred_fallthru
    _
  %v4 = vld [vmem:[%s0] ss:$0 sm:$0xff]
  %5 = vst [vmem:[%s1] sm:$0xff] %v4

// kernel: tile.0
$region0: #{tile.0}
  %s0 = inlined_call_operand.vmem [shape: f32[8,8], index: 0, kind: input, shape index: {}]
  %s1 = inlined_call_operand.vmem [shape: f32[64,1], index: 1, kind: output, shape index: {}]
  %v2 = vld [vmem:[%s0] sm:$0xff]
  %vm3 = vcmask 7168
  %4 = vst.msk [vmem:[%s1] ss:$8 sm:$0xf] %vm3, %v2
  %5 = vst.msk [vmem:[%s1] ss:$8 sm:$0xf0] %vm3, %v2
  %v6 = vld [vmem:[%s0] sm:$0xff]
  %7 = vrot.lane.b32.xlu0 %v6, 127
  %v8 = vpop.permute.xlu0 %7
  %vm9 = vcmask 7168
  %s10 = scalar_lea.vmem %s1, 1
  %11 = vst.msk [vmem:[%s10] ss:$8 sm:$0xf] %vm9, %v8
  %s12 = scalar_lea.vmem %s1, 1
  %13 = vst.msk [vmem:[%s12] ss:$8 sm:$0xf0] %vm9, %v8
  %v14 = vld [vmem:[%s0] sm:$0xff]
  %15 = vrot.lane.b32.xlu0 %v14, 126
  %v16 = vpop.permute.xlu0 %15
  %vm17 = vcmask 7168
  %s18 = scalar_lea.vmem %s1, 2
  %19 = vst.msk [vmem:[%s18] ss:$8 sm:$0xf] %vm17, %v16
  %s20 = scalar_lea.vmem %s1, 2
  %21 = vst.msk [vmem:[%s20] ss:$8 sm:$0xf0] %vm17, %v16
  %v22 = vld [vmem:[%s0] sm:$0xff]
  %23 = vrot.lane.b32.xlu0 %v22, 125
  %v24 = vpop.permute.xlu0 %23
  %vm25 = vcmask 7168
  %s26 = scalar_lea.vmem %s1, 3
  %27 = vst.msk [vmem:[%s26] ss:$8 sm:$0xf] %vm25, %v24
  %s28 = scalar_lea.vmem %s1, 3
  %29 = vst.msk [vmem:[%s28] ss:$8 sm:$0xf0] %vm25, %v24
  %v30 = vld [vmem:[%s0] sm:$0xff]
  %31 = vrot.lane.b32.xlu0 %v30, 124
  %v32 = vpop.permute.xlu0 %31
  %vm33 = vcmask 7168
  %s34 = scalar_lea.vmem %s1, 4
  %35 = vst.msk [vmem:[%s34] ss:$8 sm:$0xf] %vm33, %v32
  %s36 = scalar_lea.vmem %s1, 4
  %37 = vst.msk [vmem:[%s36] ss:$8 sm:$0xf0] %vm33, %v32
  %v38 = vld [vmem:[%s0] sm:$0xff]
  %39 = vrot.lane.b32.xlu0 %v38, 123
  %v40 = vpop.permute.xlu0 %39
  %vm41 = vcmask 7168
  %s42 = scalar_lea.vmem %s1, 5
  %43 = vst.msk [vmem:[%s42] ss:$8 sm:$0xf] %vm41, %v40
  %s44 = scalar_lea.vmem %s1, 5
  %45 = vst.msk [vmem:[%s44] ss:$8 sm:$0xf0] %vm41, %v40
  %v46 = vld [vmem:[%s0] sm:$0xff]
  %47 = vrot.lane.b32.xlu0 %v46, 122
  %v48 = vpop.permute.xlu0 %47
  %vm49 = vcmask 7168
  %s50 = scalar_lea.vmem %s1, 6
  %51 = vst.msk [vmem:[%s50] ss:$8 sm:$0xf] %vm49, %v48
  %s52 = scalar_lea.vmem %s1, 6
  %53 = vst.msk [vmem:[%s52] ss:$8 sm:$0xf0] %vm49, %v48
  %v54 = vld [vmem:[%s0] sm:$0xff]
  %55 = vrot.lane.b32.xlu0 %v54, 121
  %v56 = vpop.permute.xlu0 %55
  %vm57 = vcmask 7168
  %s58 = scalar_lea.vmem %s1, 7
  %59 = vst.msk [vmem:[%s58] ss:$8 sm:$0xf] %vm57, %v56
  %s60 = scalar_lea.vmem %s1, 7
  %61 = vst.msk [vmem:[%s60] ss:$8 sm:$0xf0] %vm57, %v56

// kernel: time_equiv_conv_forward.1
$region0: #{time_equiv_conv_forward.1}
  #allocation0 [shape = 'u32[]', space=smem, size = 0x4, offset = 0x4, fixed_abs, tag = 'smem constant byte address 0x4 - core index']
  #allocation1 [shape = 'u32[144,128]{1,0:T(1,128)}', space=vmem, size = 0x12000, scoped, tag = 'internal scratch']
  %s0 = inlined_call_operand.vmem [shape: bf16[128,16], index: 0, kind: input, shape index: {}]
  %s1 = inlined_call_operand.vmem [shape: bf16[16,16], index: 1, kind: input, shape index: {}]
  %s2 = inlined_call_operand.vmem [shape: f32[1,16], index: 2, kind: input, shape index: {}]
  %s3 = inlined_call_operand.vmem [shape: bf16[16,360], index: 3, kind: input, shape index: {}]
  %s4 = inlined_call_operand.vmem [shape: f32[1,360], index: 4, kind: input, shape index: {}]
  %s5 = inlined_call_operand.vmem [shape: bf16[64,10], index: 5, kind: input, shape index: {}]
  %s6 = inlined_call_operand.vmem [shape: bf16[128,4], index: 6, kind: input, shape index: {}]
  %s7 = inlined_call_operand.vmem [shape: bf16[128,64], index: 7, kind: input, shape index: {}]
  %s8 = inlined_call_operand.vmem [shape: bf16[64,128], index: 8, kind: input, shape index: {}]
  %s9 = inlined_call_operand.vmem [shape: f32[64,1], index: 9, kind: input, shape index: {}]
  %s10 = inlined_call_operand.vmem [shape: bf16[10,40], index: 10, kind: input, shape index: {}]
  %s11 = inlined_call_operand.vmem [shape: bf16[4,40], index: 11, kind: input, shape index: {}]
  %s12 = inlined_call_operand.vmem [shape: bf16[40,360], index: 12, kind: input, shape index: {}]
  %s13 = inlined_call_operand.vmem [shape: bf16[360,128], index: 13, kind: input, shape index: {}]
  %s14 = inlined_call_operand.vmem [shape: f32[64,128], index: 14, kind: input, shape index: {}]
  %s15 = inlined_call_operand.vmem [shape: f32[1,128], index: 15, kind: input, shape index: {}]
  %s16 = inlined_call_operand.vmem [shape: f32[1,128], index: 16, kind: input, shape index: {}]
  %s17 = inlined_call_operand.vmem [shape: f32[64,128], index: 17, kind: output, shape index: {}]
  %s18 = sld [smem:[#allocation0]]
  $region78: #{time_equiv_conv_forward.1} parent=0
    _
  %s20 = ssub.s32 1, %s18
  %s21 = scalar_select 0, %s20, %s18
  // Predicated region
  $region2: #{time_equiv_conv_forward.1} parent=0 // pred_check
    _
  $region3: #{time_equiv_conv_forward.1} parent=0 // pred_check_branch
    %23 = sbr.rel (0) target = $region5
  $region4: #{time_equiv_conv_forward.1} parent=0 // pred_region
    _
  $region5: #{time_equiv_conv_forward.1} parent=0 // pred_fallthru
    _
  // Predicated region
  $region6: #{time_equiv_conv_forward.1} parent=0 // pred_check
    _
  $region7: #{time_equiv_conv_forward.1} parent=0 // pred_check_branch
    %25 = sbr.rel (0) target = $region9
  $region8: #{time_equiv_conv_forward.1} parent=0 // pred_region
    _
  $region9: #{time_equiv_conv_forward.1} parent=0 // pred_fallthru
    _
  // Predicated region
  $region10: #{time_equiv_conv_forward.1} parent=0 // pred_check
    _
  $region11: #{time_equiv_conv_forward.1} parent=0 // pred_check_branch
    %27 = sbr.rel (0) target = $region13
  $region12: #{time_equiv_conv_forward.1} parent=0 // pred_region
    _
  $region13: #{time_equiv_conv_forward.1} parent=0 // pred_fallthru
    _
  // Predicated region
  $region14: #{time_equiv_conv_forward.1} parent=0 // pred_check
    _
  $region15: #{time_equiv_conv_forward.1} parent=0 // pred_check_branch
    %29 = sbr.rel (0) target = $region17
  $region16: #{time_equiv_conv_forward.1} parent=0 // pred_region
    _
  $region17: #{time_equiv_conv_forward.1} parent=0 // pred_fallthru
    _
  // Predicated region
  $region18: #{time_equiv_conv_forward.1} parent=0 // pred_check
    _
  $region19: #{time_equiv_conv_forward.1} parent=0 // pred_check_branch
    %31 = sbr.rel (0) target = $region21
  $region20: #{time_equiv_conv_forward.1} parent=0 // pred_region
    _
  $region21: #{time_equiv_conv_forward.1} parent=0 // pred_fallthru
    _
  // Predicated region
  $region22: #{time_equiv_conv_forward.1} parent=0 // pred_check
    _
  $region23: #{time_equiv_conv_forward.1} parent=0 // pred_check_branch
    %33 = sbr.rel (0) target = $region25
  $region24: #{time_equiv_conv_forward.1} parent=0 // pred_region
    _
  $region25: #{time_equiv_conv_forward.1} parent=0 // pred_fallthru
    _
  // Predicated region
  $region26: #{time_equiv_conv_forward.1} parent=0 // pred_check
    _
  $region27: #{time_equiv_conv_forward.1} parent=0 // pred_check_branch
    %35 = sbr.rel (0) target = $region29
  $region28: #{time_equiv_conv_forward.1} parent=0 // pred_region
    _
  $region29: #{time_equiv_conv_forward.1} parent=0 // pred_fallthru
    _
  // Predicated region
  $region30: #{time_equiv_conv_forward.1} parent=0 // pred_check
    _
  $region31: #{time_equiv_conv_forward.1} parent=0 // pred_check_branch
    %37 = sbr.rel (0) target = $region33
  $region32: #{time_equiv_conv_forward.1} parent=0 // pred_region
    _
  $region33: #{time_equiv_conv_forward.1} parent=0 // pred_fallthru
    _
  // Predicated region
  $region34: #{time_equiv_conv_forward.1} parent=0 // pred_check
    _
  $region35: #{time_equiv_conv_forward.1} parent=0 // pred_check_branch
    %39 = sbr.rel (0) target = $region37
  $region36: #{time_equiv_conv_forward.1} parent=0 // pred_region
    _
  $region37: #{time_equiv_conv_forward.1} parent=0 // pred_fallthru
    _
  // Predicated region
  $region38: #{time_equiv_conv_forward.1} parent=0 // pred_check
    _
  $region39: #{time_equiv_conv_forward.1} parent=0 // pred_check_branch
    %41 = sbr.rel (0) target = $region41
  $region40: #{time_equiv_conv_forward.1} parent=0 // pred_region
    _
  $region41: #{time_equiv_conv_forward.1} parent=0 // pred_fallthru
    _
  // Predicated region
  $region42: #{time_equiv_conv_forward.1} parent=0 // pred_check
    _
  $region43: #{time_equiv_conv_forward.1} parent=0 // pred_check_branch
    %43 = sbr.rel (0) target = $region45
  $region44: #{time_equiv_conv_forward.1} parent=0 // pred_region
    _
  $region45: #{time_equiv_conv_forward.1} parent=0 // pred_fallthru
    _
  // Predicated region
  $region46: #{time_equiv_conv_forward.1} parent=0 // pred_check
    _
  $region47: #{time_equiv_conv_forward.1} parent=0 // pred_check_branch
    %45 = sbr.rel (0) target = $region49
  $region48: #{time_equiv_conv_forward.1} parent=0 // pred_region
    _
  $region49: #{time_equiv_conv_forward.1} parent=0 // pred_fallthru
    _
  // Predicated region
  $region50: #{time_equiv_conv_forward.1} parent=0 // pred_check
    _
  $region51: #{time_equiv_conv_forward.1} parent=0 // pred_check_branch
    %47 = sbr.rel (0) target = $region53
  $region52: #{time_equiv_conv_forward.1} parent=0 // pred_region
    _
  $region53: #{time_equiv_conv_forward.1} parent=0 // pred_fallthru
    _
  // Predicated region
  $region54: #{time_equiv_conv_forward.1} parent=0 // pred_check
    _
  $region55: #{time_equiv_conv_forward.1} parent=0 // pred_check_branch
    %49 = sbr.rel (0) target = $region57
  $region56: #{time_equiv_conv_forward.1} parent=0 // pred_region
    _
  $region57: #{time_equiv_conv_forward.1} parent=0 // pred_fallthru
    _
  // Predicated region
  $region58: #{time_equiv_conv_forward.1} parent=0 // pred_check
    _
  $region59: #{time_equiv_conv_forward.1} parent=0 // pred_check_branch
    %51 = sbr.rel (0) target = $region61
  $region60: #{time_equiv_conv_forward.1} parent=0 // pred_region
    _
  $region61: #{time_equiv_conv_forward.1} parent=0 // pred_fallthru
    _
  // Predicated region
  $region62: #{time_equiv_conv_forward.1} parent=0 // pred_check
    _
  $region63: #{time_equiv_conv_forward.1} parent=0 // pred_check_branch
    %53 = sbr.rel (0) target = $region65
  $region64: #{time_equiv_conv_forward.1} parent=0 // pred_region
    _
  $region65: #{time_equiv_conv_forward.1} parent=0 // pred_fallthru
    _
  // Predicated region
  $region66: #{time_equiv_conv_forward.1} parent=0 // pred_check
    _
  $region67: #{time_equiv_conv_forward.1} parent=0 // pred_check_branch
    %55 = sbr.rel (0) target = $region69
  $region68: #{time_equiv_conv_forward.1} parent=0 // pred_region
    _
  $region69: #{time_equiv_conv_forward.1} parent=0 // pred_fallthru
    _
  %v57 = vld [vmem:[%s0] sm:$0xf]
  %v58 = vld [vmem:[%s0 + $0x4] sm:$0xf]
  %v59 = vld [vmem:[%s0 + $0x8] sm:$0xf]
  %v60 = vld [vmem:[%s0 + $0xc] sm:$0xf]
  %v61 = vld [vmem:[%s0 + $0x10] sm:$0xf]
  %v62 = vld [vmem:[%s0 + $0x14] sm:$0xf]
  %v63 = vld [vmem:[%s0 + $0x18] sm:$0xf]
  %v64 = vld [vmem:[%s0 + $0x1c] sm:$0xf]
  %v65 = vld [vmem:[%s0 + $0x20] sm:$0xf]
  %v66 = vld [vmem:[%s0 + $0x24] sm:$0xf]
  %v67 = vld [vmem:[%s0 + $0x28] sm:$0xf]
  %v68 = vld [vmem:[%s0 + $0x2c] sm:$0xf]
  %v69 = vld [vmem:[%s0 + $0x30] sm:$0xf]
  %v70 = vld [vmem:[%s0 + $0x34] sm:$0xf]
  %v71 = vld [vmem:[%s0 + $0x38] sm:$0xf]
  %v72 = vld [vmem:[%s0 + $0x3c] sm:$0xf]
  %v73 = vld [vmem:[%s1] sm:$0xf]
  %v74 = vld [vmem:[%s1 + $0x4] sm:$0xf]
  %v75 = vld [vmem:[%s2] sm:$0x1]
  %v77 = vlaneseq
  %v78 = vshrl.u32 %v77, 7
  %v79 = vsub.s32 0, %v78
  %v80 = vrot.slane %v75, %v79
  %v98 = vunpack.c.l.b16 %v57
  %v99 = vunpack.c.l.b16 %v58
  %v100 = vunpack.c.l.b16 %v59
  %v101 = vunpack.c.l.b16 %v60
  %v102 = vunpack.c.l.b16 %v61
  %v103 = vunpack.c.l.b16 %v62
  %v104 = vunpack.c.l.b16 %v63
  %v105 = vunpack.c.l.b16 %v64
  %v106 = vunpack.c.l.b16 %v65
  %v107 = vunpack.c.l.b16 %v66
  %v108 = vunpack.c.l.b16 %v67
  %v109 = vunpack.c.l.b16 %v68
  %v110 = vunpack.c.l.b16 %v69
  %v111 = vunpack.c.l.b16 %v70
  %v112 = vunpack.c.l.b16 %v71
  %v113 = vunpack.c.l.b16 %v72
  %v114 = vpack.c.b16 %v99, %v98
  %v115 = vpack.c.b16 %v101, %v100
  %v116 = vpack.c.b16 %v103, %v102
  %v117 = vpack.c.b16 %v105, %v104
  %v118 = vpack.c.b16 %v107, %v106
  %v119 = vpack.c.b16 %v109, %v108
  %v120 = vpack.c.b16 %v111, %v110
  %v121 = vpack.c.b16 %v113, %v112
  %v124 = vunpack.c.l.b16 %v73
  %v125 = vunpack.c.l.b16 %v74
  %v126 = vpack.c.b16 %v125, %v124
  %vm128 = vcmask 130048
  %v130 = vsel %vm128, %v114, 0
  %v133 = vsel %vm128, %v115, 0
  %v136 = vsel %vm128, %v116, 0
  %v139 = vsel %vm128, %v117, 0
  %v142 = vsel %vm128, %v118, 0
  %v145 = vsel %vm128, %v119, 0
  %v148 = vsel %vm128, %v120, 0
  %v151 = vsel %vm128, %v121, 0
  %153 = vmatprep.subr.bf16.mxu0 0
  %154 = vmatpush1.bf16.msra.mxu0 %v126
  %155 = vmatprep.subr.bf16.mxu0 0
  %156 = vmatpush1.bf16.msra.mxu0 0
  %157 = vmatprep.subr.bf16.mxu0 0
  %158 = vmatpush1.bf16.msra.mxu0 0
  %159 = vmatprep.subr.bf16.mxu0 0
  %160 = vmatpush1.bf16.msra.mxu0 0
  %161 = vmatprep.subr.bf16.mxu0 0
  %162 = vmatpush1.bf16.msra.mxu0 0
  %163 = vmatprep.subr.bf16.mxu0 0
  %164 = vmatpush1.bf16.msra.mxu0 0
  %165 = vmatprep.subr.bf16.mxu0 0
  %166 = vmatpush1.bf16.msra.mxu0 0
  %167 = vmatprep.subr.bf16.mxu0 0
  %168 = vmatpush1.bf16.msra.mxu0 0
  %169 = vmatprep.subr.bf16.mxu0 0
  %170 = vmatpush1.bf16.msra.mxu0 0
  %171 = vmatprep.subr.bf16.mxu0 0
  %172 = vmatpush1.bf16.msra.mxu0 0
  %173 = vmatprep.subr.bf16.mxu0 0
  %174 = vmatpush1.bf16.msra.mxu0 0
  %175 = vmatprep.subr.bf16.mxu0 0
  %176 = vmatpush1.bf16.msra.mxu0 0
  %177 = vmatprep.subr.bf16.mxu0 0
  %178 = vmatpush1.bf16.msra.mxu0 0
  %179 = vmatprep.subr.bf16.mxu0 0
  %180 = vmatpush1.bf16.msra.mxu0 0
  %181 = vmatprep.subr.bf16.mxu0 0
  %182 = vmatpush1.bf16.msra.mxu0 0
  %183 = vmatprep.subr.bf16.mxu0 0
  %184 = vmatpush1.bf16.msra.mxu0 0
  %185 = vmatprep.mubr.bf16.mxu0 0
  %186 = vmatmul.mubr.bf16.gmra.mrb[0].mxu0 %v130
  %v187 = vpop.f32.mrb[0].mxu0
  %v188 = vadd.f32 %v80, %v187
  %v189 = vpop.f32.mrb[0].mxu0
  %v190 = vpop.f32.mrb[0].mxu0
  %v191 = vadd.f32 %v80, %v190
  %v192 = vpop.f32.mrb[0].mxu0
  %193 = vmatprep.mubr.bf16.mxu0 0
  %194 = vmatmul.mubr.bf16.gmra.mrb[0].mxu0 %v133
  %v195 = vpop.f32.mrb[0].mxu0
  %v196 = vadd.f32 %v80, %v195
  %v197 = vpop.f32.mrb[0].mxu0
  %v198 = vpop.f32.mrb[0].mxu0
  %v199 = vadd.f32 %v80, %v198
  %v200 = vpop.f32.mrb[0].mxu0
  %201 = vmatprep.mubr.bf16.mxu0 0
  %202 = vmatmul.mubr.bf16.gmra.mrb[0].mxu0 %v136
  %v203 = vpop.f32.mrb[0].mxu0
  %v204 = vadd.f32 %v80, %v203
  %v205 = vpop.f32.mrb[0].mxu0
  %v206 = vpop.f32.mrb[0].mxu0
  %v207 = vadd.f32 %v80, %v206
  %v208 = vpop.f32.mrb[0].mxu0
  %209 = vmatprep.mubr.bf16.mxu0 0
  %210 = vmatmul.mubr.bf16.gmra.mrb[0].mxu0 %v139
  %v211 = vpop.f32.mrb[0].mxu0
  %v212 = vadd.f32 %v80, %v211
  %v213 = vpop.f32.mrb[0].mxu0
  %v214 = vpop.f32.mrb[0].mxu0
  %v215 = vadd.f32 %v80, %v214
  %v216 = vpop.f32.mrb[0].mxu0
  %217 = vmatprep.mubr.bf16.mxu0 0
  %218 = vmatmul.mubr.bf16.gmra.mrb[0].mxu0 %v142
  %v219 = vpop.f32.mrb[0].mxu0
  %v220 = vadd.f32 %v80, %v219
  %v221 = vpop.f32.mrb[0].mxu0
  %v222 = vpop.f32.mrb[0].mxu0
  %v223 = vadd.f32 %v80, %v222
  %v224 = vpop.f32.mrb[0].mxu0
  %225 = vmatprep.mubr.bf16.mxu0 0
  %226 = vmatmul.mubr.bf16.gmra.mrb[0].mxu0 %v145
  %v227 = vpop.f32.mrb[0].mxu0
  %v228 = vadd.f32 %v80, %v227
  %v229 = vpop.f32.mrb[0].mxu0
  %v230 = vpop.f32.mrb[0].mxu0
  %v231 = vadd.f32 %v80, %v230
  %v232 = vpop.f32.mrb[0].mxu0
  %233 = vmatprep.mubr.bf16.mxu0 0
  %234 = vmatmul.mubr.bf16.gmra.mrb[0].mxu0 %v148
  %v235 = vpop.f32.mrb[0].mxu0
  %v236 = vadd.f32 %v80, %v235
  %v237 = vpop.f32.mrb[0].mxu0
  %v238 = vpop.f32.mrb[0].mxu0
  %v239 = vadd.f32 %v80, %v238
  %v240 = vpop.f32.mrb[0].mxu0
  %241 = vmatprep.mubr.bf16.mxu0 0
  %242 = vmatmul.mubr.bf16.gmra.mrb[0].mxu0 %v151
  %v243 = vpop.f32.mrb[0].mxu0
  %v244 = vadd.f32 %v80, %v243
  %v245 = vpop.f32.mrb[0].mxu0
  %v246 = vpop.f32.mrb[0].mxu0
  %v247 = vadd.f32 %v80, %v246
  %v248 = vpop.f32.mrb[0].mxu0
  %249 = vdwg.mxu0
  %v250 = vmax.f32 %v188, 0.0
  %v251 = vmax.f32 %v191, 0.0
  %v252 = vmax.f32 %v196, 0.0
  %v253 = vmax.f32 %v199, 0.0
  %v254 = vmax.f32 %v204, 0.0
  %v255 = vmax.f32 %v207, 0.0
  %v256 = vmax.f32 %v212, 0.0
  %v257 = vmax.f32 %v215, 0.0
  %v258 = vmax.f32 %v220, 0.0
  %v259 = vmax.f32 %v223, 0.0
  %v260 = vmax.f32 %v228, 0.0
  %v261 = vmax.f32 %v231, 0.0
  %v262 = vmax.f32 %v236, 0.0
  %v263 = vmax.f32 %v239, 0.0
  %v264 = vmax.f32 %v244, 0.0
  %v265 = vmax.f32 %v247, 0.0
  %v266 = vpack.c.bf16 %v251, %v250
  %v267 = vpack.c.bf16 %v253, %v252
  %v268 = vpack.c.bf16 %v255, %v254
  %v269 = vpack.c.bf16 %v257, %v256
  %v270 = vpack.c.bf16 %v259, %v258
  %v271 = vpack.c.bf16 %v261, %v260
  %v272 = vpack.c.bf16 %v263, %v262
  %v273 = vpack.c.bf16 %v265, %v264
  %v274 = vld [vmem:[%s3] sm:$0xff]
  %v275 = vld [vmem:[%s3 + $0x8] sm:$0xf]
  %v276 = vld [vmem:[%s3 + $0xc] sm:$0xff]
  %v277 = vld [vmem:[%s3 + $0x14] sm:$0xf]
  %v278 = vld [vmem:[%s4] sm:$0x7]
  %v280 = vlaneseq
  %v281 = vshrl.u32 %v280, 7
  %v282 = vsub.s32 0, %v281
  %v283 = vrot.slane %v278, %v282
  %v284 = vlaneseq
  %v285 = vshrl.u32 %v284, 7
  %v286 = vsub.s32 1, %v285
  %v287 = vrot.slane %v278, %v286
  %v288 = vlaneseq
  %v289 = vshrl.u32 %v288, 7
  %v290 = vsub.s32 2, %v289
  %v291 = vrot.slane %v278, %v290
  %v299 = vunpack.c.l.b16 %v274
  %v300 = vunpack.c.h.b16 %v274
  %v301 = vunpack.c.l.b16 %v275
  %v302 = vunpack.c.l.b16 %v276
  %v303 = vunpack.c.h.b16 %v276
  %v304 = vunpack.c.l.b16 %v277
  %v305 = vpack.c.b16 %v302, %v299
  %v306 = vpack.c.b16 %v303, %v300
  %v307 = vpack.c.b16 %v304, %v301
  %v312 = vsel %vm128, %v266, 0
  %v315 = vsel %vm128, %v267, 0
  %v318 = vsel %vm128, %v268, 0
  %v321 = vsel %vm128, %v269, 0
  %v324 = vsel %vm128, %v270, 0
  %v327 = vsel %vm128, %v271, 0
  %v330 = vsel %vm128, %v272, 0
  %v333 = vsel %vm128, %v273, 0
  %335 = vmatprep.subr.bf16.mxu0 %v306
  %336 = vmatpush1.bf16.msra.mxu0 %v305
  %337 = vmatprep.subr.bf16.mxu0 0
  %338 = vmatpush1.bf16.msra.mxu0 0
  %339 = vmatprep.subr.bf16.mxu0 0
  %340 = vmatpush1.bf16.msra.mxu0 0
  %341 = vmatprep.subr.bf16.mxu0 0
  %342 = vmatpush1.bf16.msra.mxu0 0
  %343 = vmatprep.subr.bf16.mxu0 0
  %344 = vmatpush1.bf16.msra.mxu0 0
  %345 = vmatprep.subr.bf16.mxu0 0
  %346 = vmatpush1.bf16.msra.mxu0 0
  %347 = vmatprep.subr.bf16.mxu0 0
  %348 = vmatpush1.bf16.msra.mxu0 0
  %349 = vmatprep.subr.bf16.mxu0 0
  %350 = vmatpush1.bf16.msra.mxu0 0
  %351 = vmatprep.subr.bf16.mxu0 0
  %352 = vmatpush1.bf16.msra.mxu0 0
  %353 = vmatprep.subr.bf16.mxu0 0
  %354 = vmatpush1.bf16.msra.mxu0 0
  %355 = vmatprep.subr.bf16.mxu0 0
  %356 = vmatpush1.bf16.msra.mxu0 0
  %357 = vmatprep.subr.bf16.mxu0 0
  %358 = vmatpush1.bf16.msra.mxu0 0
  %359 = vmatprep.subr.bf16.mxu0 0
  %360 = vmatpush1.bf16.msra.mxu0 0
  %361 = vmatprep.subr.bf16.mxu0 0
  %362 = vmatpush1.bf16.msra.mxu0 0
  %363 = vmatprep.subr.bf16.mxu0 0
  %364 = vmatpush1.bf16.msra.mxu0 0
  %365 = vmatprep.subr.bf16.mxu0 0
  %366 = vmatpush1.bf16.msra.mxu0 0
  %367 = vmatprep.mubr.bf16.mxu0 0
  %368 = vmatmul.mubr.bf16.gmra.mrb[0].mxu0 %v312
  %v369 = vpop.f32.mrb[0].mxu0
  %v370 = vadd.f32 %v283, %v369
  %v371 = vpop.f32.mrb[0].mxu0
  %v372 = vadd.f32 %v287, %v371
  %v373 = vpop.f32.mrb[0].mxu0
  %v374 = vadd.f32 %v283, %v373
  %v375 = vpop.f32.mrb[0].mxu0
  %v376 = vadd.f32 %v287, %v375
  %377 = vmatprep.mubr.bf16.mxu0 0
  %378 = vmatmul.mubr.bf16.gmra.mrb[0].mxu0 %v315
  %v379 = vpop.f32.mrb[0].mxu0
  %v380 = vadd.f32 %v283, %v379
  %v381 = vpop.f32.mrb[0].mxu0
  %v382 = vadd.f32 %v287, %v381
  %v383 = vpop.f32.mrb[0].mxu0
  %v384 = vadd.f32 %v283, %v383
  %v385 = vpop.f32.mrb[0].mxu0
  %v386 = vadd.f32 %v287, %v385
  %387 = vmatprep.mubr.bf16.mxu0 0
  %388 = vmatmul.mubr.bf16.gmra.mrb[0].mxu0 %v318
  %v389 = vpop.f32.mrb[0].mxu0
  %v390 = vadd.f32 %v283, %v389
  %v391 = vpop.f32.mrb[0].mxu0
  %v392 = vadd.f32 %v287, %v391
  %v393 = vpop.f32.mrb[0].mxu0
  %v394 = vadd.f32 %v283, %v393
  %v395 = vpop.f32.mrb[0].mxu0
  %v396 = vadd.f32 %v287, %v395
  %397 = vmatprep.mubr.bf16.mxu0 0
  %398 = vmatmul.mubr.bf16.gmra.mrb[0].mxu0 %v321
  %v399 = vpop.f32.mrb[0].mxu0
  %v400 = vadd.f32 %v283, %v399
  %v401 = vpop.f32.mrb[0].mxu0
  %v402 = vadd.f32 %v287, %v401
  %v403 = vpop.f32.mrb[0].mxu0
  %v404 = vadd.f32 %v283, %v403
  %v405 = vpop.f32.mrb[0].mxu0
  %v406 = vadd.f32 %v287, %v405
  %407 = vmatprep.mubr.bf16.mxu0 0
  %408 = vmatmul.mubr.bf16.gmra.mrb[0].mxu0 %v324
  %v409 = vpop.f32.mrb[0].mxu0
  %v410 = vadd.f32 %v283, %v409
  %v411 = vpop.f32.mrb[0].mxu0
  %v412 = vadd.f32 %v287, %v411
  %v413 = vpop.f32.mrb[0].mxu0
  %v414 = vadd.f32 %v283, %v413
  %v415 = vpop.f32.mrb[0].mxu0
  %v416 = vadd.f32 %v287, %v415
  %417 = vmatprep.mubr.bf16.mxu0 0
  %418 = vmatmul.mubr.bf16.gmra.mrb[0].mxu0 %v327
  %v419 = vpop.f32.mrb[0].mxu0
  %v420 = vadd.f32 %v283, %v419
  %v421 = vpop.f32.mrb[0].mxu0
  %v422 = vadd.f32 %v287, %v421
  %v423 = vpop.f32.mrb[0].mxu0
  %v424 = vadd.f32 %v283, %v423
  %v425 = vpop.f32.mrb[0].mxu0
  %v426 = vadd.f32 %v287, %v425
  %427 = vmatprep.mubr.bf16.mxu0 0
  %428 = vmatmul.mubr.bf16.gmra.mrb[0].mxu0 %v330
  %v429 = vpop.f32.mrb[0].mxu0
  %v430 = vadd.f32 %v283, %v429
  %v431 = vpop.f32.mrb[0].mxu0
  %v432 = vadd.f32 %v287, %v431
  %v433 = vpop.f32.mrb[0].mxu0
  %v434 = vadd.f32 %v283, %v433
  %v435 = vpop.f32.mrb[0].mxu0
  %v436 = vadd.f32 %v287, %v435
  %437 = vmatprep.mubr.bf16.mxu0 0
  %438 = vmatmul.mubr.bf16.gmra.mrb[0].mxu0 %v333
  %v439 = vpop.f32.mrb[0].mxu0
  %v440 = vadd.f32 %v283, %v439
  %v441 = vpop.f32.mrb[0].mxu0
  %v442 = vadd.f32 %v287, %v441
  %v443 = vpop.f32.mrb[0].mxu0
  %v444 = vadd.f32 %v283, %v443
  %v445 = vpop.f32.mrb[0].mxu0
  %v446 = vadd.f32 %v287, %v445
  %447 = vdwg.mxu0
  %448 = vmatprep.subr.bf16.mxu0 0
  %449 = vmatpush1.bf16.msra.mxu0 %v307
  %450 = vmatprep.subr.bf16.mxu0 0
  %451 = vmatpush1.bf16.msra.mxu0 0
  %452 = vmatprep.subr.bf16.mxu0 0
  %453 = vmatpush1.bf16.msra.mxu0 0
  %454 = vmatprep.subr.bf16.mxu0 0
  %455 = vmatpush1.bf16.msra.mxu0 0
  %456 = vmatprep.subr.bf16.mxu0 0
  %457 = vmatpush1.bf16.msra.mxu0 0
  %458 = vmatprep.subr.bf16.mxu0 0
  %459 = vmatpush1.bf16.msra.mxu0 0
  %460 = vmatprep.subr.bf16.mxu0 0
  %461 = vmatpush1.bf16.msra.mxu0 0
  %462 = vmatprep.subr.bf16.mxu0 0
  %463 = vmatpush1.bf16.msra.mxu0 0
  %464 = vmatprep.subr.bf16.mxu0 0
  %465 = vmatpush1.bf16.msra.mxu0 0
  %466 = vmatprep.subr.bf16.mxu0 0
  %467 = vmatpush1.bf16.msra.mxu0 0
  %468 = vmatprep.subr.bf16.mxu0 0
  %469 = vmatpush1.bf16.msra.mxu0 0
  %470 = vmatprep.subr.bf16.mxu0 0
  %471 = vmatpush1.bf16.msra.mxu0 0
  %472 = vmatprep.subr.bf16.mxu0 0
  %473 = vmatpush1.bf16.msra.mxu0 0
  %474 = vmatprep.subr.bf16.mxu0 0
  %475 = vmatpush1.bf16.msra.mxu0 0
  %476 = vmatprep.subr.bf16.mxu0 0
  %477 = vmatpush1.bf16.msra.mxu0 0
  %478 = vmatprep.subr.bf16.mxu0 0
  %479 = vmatpush1.bf16.msra.mxu0 0
  %480 = vmatprep.mubr.bf16.mxu0 0
  %481 = vmatmul.mubr.bf16.gmra.mrb[0].mxu0 %v312
  %v482 = vpop.f32.mrb[0].mxu0
  %v483 = vadd.f32 %v291, %v482
  %v484 = vpop.f32.mrb[0].mxu0
  %v485 = vpop.f32.mrb[0].mxu0
  %v486 = vadd.f32 %v291, %v485
  %v487 = vpop.f32.mrb[0].mxu0
  %488 = vmatprep.mubr.bf16.mxu0 0
  %489 = vmatmul.mubr.bf16.gmra.mrb[0].mxu0 %v315
  %v490 = vpop.f32.mrb[0].mxu0
  %v491 = vadd.f32 %v291, %v490
  %v492 = vpop.f32.mrb[0].mxu0
  %v493 = vpop.f32.mrb[0].mxu0
  %v494 = vadd.f32 %v291, %v493
  %v495 = vpop.f32.mrb[0].mxu0
  %496 = vmatprep.mubr.bf16.mxu0 0
  %497 = vmatmul.mubr.bf16.gmra.mrb[0].mxu0 %v318
  %v498 = vpop.f32.mrb[0].mxu0
  %v499 = vadd.f32 %v291, %v498
  %v500 = vpop.f32.mrb[0].mxu0
  %v501 = vpop.f32.mrb[0].mxu0
  %v502 = vadd.f32 %v291, %v501
  %v503 = vpop.f32.mrb[0].mxu0
  %504 = vmatprep.mubr.bf16.mxu0 0
  %505 = vmatmul.mubr.bf16.gmra.mrb[0].mxu0 %v321
  %v506 = vpop.f32.mrb[0].mxu0
  %v507 = vadd.f32 %v291, %v506
  %v508 = vpop.f32.mrb[0].mxu0
  %v509 = vpop.f32.mrb[0].mxu0
  %v510 = vadd.f32 %v291, %v509
  %v511 = vpop.f32.mrb[0].mxu0
  %512 = vmatprep.mubr.bf16.mxu0 0
  %513 = vmatmul.mubr.bf16.gmra.mrb[0].mxu0 %v324
  %v514 = vpop.f32.mrb[0].mxu0
  %v515 = vadd.f32 %v291, %v514
  %v516 = vpop.f32.mrb[0].mxu0
  %v517 = vpop.f32.mrb[0].mxu0
  %v518 = vadd.f32 %v291, %v517
  %v519 = vpop.f32.mrb[0].mxu0
  %520 = vmatprep.mubr.bf16.mxu0 0
  %521 = vmatmul.mubr.bf16.gmra.mrb[0].mxu0 %v327
  %v522 = vpop.f32.mrb[0].mxu0
  %v523 = vadd.f32 %v291, %v522
  %v524 = vpop.f32.mrb[0].mxu0
  %v525 = vpop.f32.mrb[0].mxu0
  %v526 = vadd.f32 %v291, %v525
  %v527 = vpop.f32.mrb[0].mxu0
  %528 = vmatprep.mubr.bf16.mxu0 0
  %529 = vmatmul.mubr.bf16.gmra.mrb[0].mxu0 %v330
  %v530 = vpop.f32.mrb[0].mxu0
  %v531 = vadd.f32 %v291, %v530
  %v532 = vpop.f32.mrb[0].mxu0
  %v533 = vpop.f32.mrb[0].mxu0
  %v534 = vadd.f32 %v291, %v533
  %v535 = vpop.f32.mrb[0].mxu0
  %536 = vmatprep.mubr.bf16.mxu0 0
  %537 = vmatmul.mubr.bf16.gmra.mrb[0].mxu0 %v333
  %v538 = vpop.f32.mrb[0].mxu0
  %v539 = vadd.f32 %v291, %v538
  %v540 = vpop.f32.mrb[0].mxu0
  %v541 = vpop.f32.mrb[0].mxu0
  %v542 = vadd.f32 %v291, %v541
  %v543 = vpop.f32.mrb[0].mxu0
  %544 = vdwg.mxu0
  %v545 = vld [vmem:[%s7] sm:$0xf]
  %v546 = vld [vmem:[%s7 + $0x4] sm:$0xf]
  %v547 = vld [vmem:[%s7 + $0x8] sm:$0xf]
  %v548 = vld [vmem:[%s7 + $0xc] sm:$0xf]
  %v549 = vld [vmem:[%s7 + $0x10] sm:$0xf]
  %v550 = vld [vmem:[%s7 + $0x14] sm:$0xf]
  %v551 = vld [vmem:[%s7 + $0x18] sm:$0xf]
  %v552 = vld [vmem:[%s7 + $0x1c] sm:$0xf]
  %v553 = vld [vmem:[%s7 + $0x20] sm:$0xf]
  %v554 = vld [vmem:[%s7 + $0x24] sm:$0xf]
  %v555 = vld [vmem:[%s7 + $0x28] sm:$0xf]
  %v556 = vld [vmem:[%s7 + $0x2c] sm:$0xf]
  %v557 = vld [vmem:[%s7 + $0x30] sm:$0xf]
  %v558 = vld [vmem:[%s7 + $0x34] sm:$0xf]
  %v559 = vld [vmem:[%s7 + $0x38] sm:$0xf]
  %v560 = vld [vmem:[%s7 + $0x3c] sm:$0xf]
  %v561 = vld [vmem:[%s5] sm:$0xf]
  %v562 = vld [vmem:[%s5 + $0x4] sm:$0xf]
  %v563 = vld [vmem:[%s5 + $0x8] sm:$0xf]
  %v564 = vld [vmem:[%s5 + $0xc] sm:$0xf]
  %v565 = vld [vmem:[%s5 + $0x10] sm:$0xf]
  %v566 = vld [vmem:[%s5 + $0x14] sm:$0xf]
  %v567 = vld [vmem:[%s5 + $0x18] sm:$0xf]
  %v568 = vld [vmem:[%s5 + $0x1c] sm:$0xf]
  %v585 = vunpack.c.l.b16 %v545
  %v586 = vunpack.c.l.b16 %v546
  %v587 = vunpack.c.l.b16 %v547
  %v588 = vunpack.c.l.b16 %v548
  %v589 = vunpack.c.l.b16 %v549
  %v590 = vunpack.c.l.b16 %v550
  %v591 = vunpack.c.l.b16 %v551
  %v592 = vunpack.c.l.b16 %v552
  %v593 = vunpack.c.l.b16 %v553
  %v594 = vunpack.c.l.b16 %v554
  %v595 = vunpack.c.l.b16 %v555
  %v596 = vunpack.c.l.b16 %v556
  %v597 = vunpack.c.l.b16 %v557
  %v598 = vunpack.c.l.b16 %v558
  %v599 = vunpack.c.l.b16 %v559
  %v600 = vunpack.c.l.b16 %v560
  %v601 = vpack.c.b16 %v586, %v585
  %v602 = vpack.c.b16 %v588, %v587
  %v603 = vpack.c.b16 %v590, %v589
  %v604 = vpack.c.b16 %v592, %v591
  %v605 = vpack.c.b16 %v594, %v593
  %v606 = vpack.c.b16 %v596, %v595
  %v607 = vpack.c.b16 %v598, %v597
  %v608 = vpack.c.b16 %v600, %v599
  %v617 = vunpack.c.l.b16 %v561
  %v618 = vunpack.c.l.b16 %v562
  %v619 = vunpack.c.l.b16 %v563
  %v620 = vunpack.c.l.b16 %v564
  %v621 = vunpack.c.l.b16 %v565
  %v622 = vunpack.c.l.b16 %v566
  %v623 = vunpack.c.l.b16 %v567
  %v624 = vunpack.c.l.b16 %v568
  %v625 = vpack.c.b16 %v618, %v617
  %v626 = vpack.c.b16 %v620, %v619
  %v627 = vpack.c.b16 %v622, %v621
  %v628 = vpack.c.b16 %v624, %v623
  %vm633 = vcmask 523264
  %v635 = vsel %vm633, %v601, 0
  %v638 = vsel %vm633, %v602, 0
  %v641 = vsel %vm633, %v603, 0
  %v644 = vsel %vm633, %v604, 0
  %v647 = vsel %vm633, %v605, 0
  %v650 = vsel %vm633, %v606, 0
  %v653 = vsel %vm633, %v607, 0
  %v656 = vsel %vm633, %v608, 0
  %658 = vmatprep.subr.bf16.mxu0 0
  %659 = vmatpush1.bf16.msra.mxu0 %v625
  %660 = vmatprep.subr.bf16.mxu0 0
  %661 = vmatpush1.bf16.msra.mxu0 %v626
  %662 = vmatprep.subr.bf16.mxu0 0
  %663 = vmatpush1.bf16.msra.mxu0 %v627
  %664 = vmatprep.subr.bf16.mxu0 0
  %665 = vmatpush1.bf16.msra.mxu0 %v628
  %666 = vmatprep.subr.bf16.mxu0 0
  %667 = vmatpush1.bf16.msra.mxu0 0
  %668 = vmatprep.subr.bf16.mxu0 0
  %669 = vmatpush1.bf16.msra.mxu0 0
  %670 = vmatprep.subr.bf16.mxu0 0
  %671 = vmatpush1.bf16.msra.mxu0 0
  %672 = vmatprep.subr.bf16.mxu0 0
  %673 = vmatpush1.bf16.msra.mxu0 0
  %674 = vmatprep.subr.bf16.mxu0 0
  %675 = vmatpush1.bf16.msra.mxu0 0
  %676 = vmatprep.subr.bf16.mxu0 0
  %677 = vmatpush1.bf16.msra.mxu0 0
  %678 = vmatprep.subr.bf16.mxu0 0
  %679 = vmatpush1.bf16.msra.mxu0 0
  %680 = vmatprep.subr.bf16.mxu0 0
  %681 = vmatpush1.bf16.msra.mxu0 0
  %682 = vmatprep.subr.bf16.mxu0 0
  %683 = vmatpush1.bf16.msra.mxu0 0
  %684 = vmatprep.subr.bf16.mxu0 0
  %685 = vmatpush1.bf16.msra.mxu0 0
  %686 = vmatprep.subr.bf16.mxu0 0
  %687 = vmatpush1.bf16.msra.mxu0 0
  %688 = vmatprep.subr.bf16.mxu0 0
  %689 = vmatpush1.bf16.msra.mxu0 0
  %690 = vmatprep.mubr.bf16.mxu0 0
  %691 = vmatmul.mubr.bf16.gmra.mrb[0].mxu0 %v635
  %v692 = vpop.f32.mrb[0].mxu0
  %v693 = vadd.f32 0.0, %v692
  %v694 = vpop.f32.mrb[0].mxu0
  %v695 = vpop.f32.mrb[0].mxu0
  %v696 = vadd.f32 0.0, %v695
  %v697 = vpop.f32.mrb[0].mxu0
  %698 = vmatprep.mubr.bf16.mxu0 0
  %699 = vmatmul.mubr.bf16.gmra.mrb[0].mxu0 %v638
  %v700 = vpop.f32.mrb[0].mxu0
  %v701 = vadd.f32 0.0, %v700
  %v702 = vpop.f32.mrb[0].mxu0
  %v703 = vpop.f32.mrb[0].mxu0
  %v704 = vadd.f32 0.0, %v703
  %v705 = vpop.f32.mrb[0].mxu0
  %706 = vmatprep.mubr.bf16.mxu0 0
  %707 = vmatmul.mubr.bf16.gmra.mrb[0].mxu0 %v641
  %v708 = vpop.f32.mrb[0].mxu0
  %v709 = vadd.f32 0.0, %v708
  %v710 = vpop.f32.mrb[0].mxu0
  %v711 = vpop.f32.mrb[0].mxu0
  %v712 = vadd.f32 0.0, %v711
  %v713 = vpop.f32.mrb[0].mxu0
  %714 = vmatprep.mubr.bf16.mxu0 0
  %715 = vmatmul.mubr.bf16.gmra.mrb[0].mxu0 %v644
  %v716 = vpop.f32.mrb[0].mxu0
  %v717 = vadd.f32 0.0, %v716
  %v718 = vpop.f32.mrb[0].mxu0
  %v719 = vpop.f32.mrb[0].mxu0
  %v720 = vadd.f32 0.0, %v719
  %v721 = vpop.f32.mrb[0].mxu0
  %722 = vmatprep.mubr.bf16.mxu0 0
  %723 = vmatmul.mubr.bf16.gmra.mrb[0].mxu0 %v647
  %v724 = vpop.f32.mrb[0].mxu0
  %v725 = vadd.f32 0.0, %v724
  %v726 = vpop.f32.mrb[0].mxu0
  %v727 = vpop.f32.mrb[0].mxu0
  %v728 = vadd.f32 0.0, %v727
  %v729 = vpop.f32.mrb[0].mxu0
  %730 = vmatprep.mubr.bf16.mxu0 0
  %731 = vmatmul.mubr.bf16.gmra.mrb[0].mxu0 %v650
  %v732 = vpop.f32.mrb[0].mxu0
  %v733 = vadd.f32 0.0, %v732
  %v734 = vpop.f32.mrb[0].mxu0
  %v735 = vpop.f32.mrb[0].mxu0
  %v736 = vadd.f32 0.0, %v735
  %v737 = vpop.f32.mrb[0].mxu0
  %738 = vmatprep.mubr.bf16.mxu0 0
  %739 = vmatmul.mubr.bf16.gmra.mrb[0].mxu0 %v653
  %v740 = vpop.f32.mrb[0].mxu0
  %v741 = vadd.f32 0.0, %v740
  %v742 = vpop.f32.mrb[0].mxu0
  %v743 = vpop.f32.mrb[0].mxu0
  %v744 = vadd.f32 0.0, %v743
  %v745 = vpop.f32.mrb[0].mxu0
  %746 = vmatprep.mubr.bf16.mxu0 0
  %747 = vmatmul.mubr.bf16.gmra.mrb[0].mxu0 %v656
  %v748 = vpop.f32.mrb[0].mxu0
  %v749 = vadd.f32 0.0, %v748
  %v750 = vpop.f32.mrb[0].mxu0
  %v751 = vpop.f32.mrb[0].mxu0
  %v752 = vadd.f32 0.0, %v751
  %v753 = vpop.f32.mrb[0].mxu0
  %754 = vdwg.mxu0
  %v755 = vpack.c.bf16 %v696, %v693
  %v756 = vpack.c.bf16 %v704, %v701
  %v757 = vpack.c.bf16 %v712, %v709
  %v758 = vpack.c.bf16 %v720, %v717
  %v759 = vpack.c.bf16 %v728, %v725
  %v760 = vpack.c.bf16 %v736, %v733
  %v761 = vpack.c.bf16 %v744, %v741
  %v762 = vpack.c.bf16 %v752, %v749
  %v763 = vld [vmem:[%s10] sm:$0xf]
  %v764 = vld [vmem:[%s10 + $0x4] sm:$0x1]
  %v767 = vunpack.c.l.b16 %v763
  %v768 = vunpack.c.l.b16 %v764
  %v769 = vpack.c.b16 %v768, %v767
  %vm770 = vcmask 80896
  %v772 = vsel %vm770, %v755, 0
  %v775 = vsel %vm770, %v756, 0
  %v778 = vsel %vm770, %v757, 0
  %v781 = vsel %vm770, %v758, 0
  %v784 = vsel %vm770, %v759, 0
  %v787 = vsel %vm770, %v760, 0
  %v790 = vsel %vm770, %v761, 0
  %v793 = vsel %vm770, %v762, 0
  %vm795 = vcmask 1044480
  %v797 = vsel %vm795, %v769, 0
  %799 = vmatprep.subr.bf16.mxu0 0
  %800 = vmatpush1.bf16.msra.mxu0 %v797
  %801 = vmatprep.subr.bf16.mxu0 0
  %802 = vmatpush1.bf16.msra.mxu0 0
  %803 = vmatprep.subr.bf16.mxu0 0
  %804 = vmatpush1.bf16.msra.mxu0 0
  %805 = vmatprep.subr.bf16.mxu0 0
  %806 = vmatpush1.bf16.msra.mxu0 0
  %807 = vmatprep.subr.bf16.mxu0 0
  %808 = vmatpush1.bf16.msra.mxu0 0
  %809 = vmatprep.subr.bf16.mxu0 0
  %810 = vmatpush1.bf16.msra.mxu0 0
  %811 = vmatprep.subr.bf16.mxu0 0
  %812 = vmatpush1.bf16.msra.mxu0 0
  %813 = vmatprep.subr.bf16.mxu0 0
  %814 = vmatpush1.bf16.msra.mxu0 0
  %815 = vmatprep.subr.bf16.mxu0 0
  %816 = vmatpush1.bf16.msra.mxu0 0
  %817 = vmatprep.subr.bf16.mxu0 0
  %818 = vmatpush1.bf16.msra.mxu0 0
  %819 = vmatprep.subr.bf16.mxu0 0
  %820 = vmatpush1.bf16.msra.mxu0 0
  %821 = vmatprep.subr.bf16.mxu0 0
  %822 = vmatpush1.bf16.msra.mxu0 0
  %823 = vmatprep.subr.bf16.mxu0 0
  %824 = vmatpush1.bf16.msra.mxu0 0
  %825 = vmatprep.subr.bf16.mxu0 0
  %826 = vmatpush1.bf16.msra.mxu0 0
  %827 = vmatprep.subr.bf16.mxu0 0
  %828 = vmatpush1.bf16.msra.mxu0 0
  %829 = vmatprep.subr.bf16.mxu0 0
  %830 = vmatpush1.bf16.msra.mxu0 0
  %831 = vmatprep.mubr.bf16.mxu0 0
  %832 = vmatmul.mubr.bf16.gmra.mrb[0].mxu0 %v772
  %v833 = vpop.f32.mrb[0].mxu0
  %v834 = vadd.f32 0.0, %v833
  %v835 = vpop.f32.mrb[0].mxu0
  %v836 = vpop.f32.mrb[0].mxu0
  %v837 = vadd.f32 0.0, %v836
  %v838 = vpop.f32.mrb[0].mxu0
  %839 = vmatprep.mubr.bf16.mxu0 0
  %840 = vmatmul.mubr.bf16.gmra.mrb[0].mxu0 %v775
  %v841 = vpop.f32.mrb[0].mxu0
  %v842 = vadd.f32 0.0, %v841
  %v843 = vpop.f32.mrb[0].mxu0
  %v844 = vpop.f32.mrb[0].mxu0
  %v845 = vadd.f32 0.0, %v844
  %v846 = vpop.f32.mrb[0].mxu0
  %847 = vmatprep.mubr.bf16.mxu0 0
  %848 = vmatmul.mubr.bf16.gmra.mrb[0].mxu0 %v778
  %v849 = vpop.f32.mrb[0].mxu0
  %v850 = vadd.f32 0.0, %v849
  %v851 = vpop.f32.mrb[0].mxu0
  %v852 = vpop.f32.mrb[0].mxu0
  %v853 = vadd.f32 0.0, %v852
  %v854 = vpop.f32.mrb[0].mxu0
  %855 = vmatprep.mubr.bf16.mxu0 0
  %856 = vmatmul.mubr.bf16.gmra.mrb[0].mxu0 %v781
  %v857 = vpop.f32.mrb[0].mxu0
  %v858 = vadd.f32 0.0, %v857
  %v859 = vpop.f32.mrb[0].mxu0
  %v860 = vpop.f32.mrb[0].mxu0
  %v861 = vadd.f32 0.0, %v860
  %v862 = vpop.f32.mrb[0].mxu0
  %863 = vmatprep.mubr.bf16.mxu0 0
  %864 = vmatmul.mubr.bf16.gmra.mrb[0].mxu0 %v784
  %v865 = vpop.f32.mrb[0].mxu0
  %v866 = vadd.f32 0.0, %v865
  %v867 = vpop.f32.mrb[0].mxu0
  %v868 = vpop.f32.mrb[0].mxu0
  %v869 = vadd.f32 0.0, %v868
  %v870 = vpop.f32.mrb[0].mxu0
  %871 = vmatprep.mubr.bf16.mxu0 0
  %872 = vmatmul.mubr.bf16.gmra.mrb[0].mxu0 %v787
  %v873 = vpop.f32.mrb[0].mxu0
  %v874 = vadd.f32 0.0, %v873
  %v875 = vpop.f32.mrb[0].mxu0
  %v876 = vpop.f32.mrb[0].mxu0
  %v877 = vadd.f32 0.0, %v876
  %v878 = vpop.f32.mrb[0].mxu0
  %879 = vmatprep.mubr.bf16.mxu0 0
  %880 = vmatmul.mubr.bf16.gmra.mrb[0].mxu0 %v790
  %v881 = vpop.f32.mrb[0].mxu0
  %v882 = vadd.f32 0.0, %v881
  %v883 = vpop.f32.mrb[0].mxu0
  %v884 = vpop.f32.mrb[0].mxu0
  %v885 = vadd.f32 0.0, %v884
  %v886 = vpop.f32.mrb[0].mxu0
  %887 = vmatprep.mubr.bf16.mxu0 0
  %888 = vmatmul.mubr.bf16.gmra.mrb[0].mxu0 %v793
  %v889 = vpop.f32.mrb[0].mxu0
  %v890 = vadd.f32 0.0, %v889
  %v891 = vpop.f32.mrb[0].mxu0
  %v892 = vpop.f32.mrb[0].mxu0
  %v893 = vadd.f32 0.0, %v892
  %v894 = vpop.f32.mrb[0].mxu0
  %895 = vdwg.mxu0
  %v896 = vld [vmem:[%s6] sm:$0xf]
  %v897 = vld [vmem:[%s6 + $0x4] sm:$0xf]
  %v898 = vld [vmem:[%s6 + $0x8] sm:$0xf]
  %v899 = vld [vmem:[%s6 + $0xc] sm:$0xf]
  %v900 = vld [vmem:[%s6 + $0x10] sm:$0xf]
  %v901 = vld [vmem:[%s6 + $0x14] sm:$0xf]
  %v902 = vld [vmem:[%s6 + $0x18] sm:$0xf]
  %v903 = vld [vmem:[%s6 + $0x1c] sm:$0xf]
  %v904 = vld [vmem:[%s6 + $0x20] sm:$0xf]
  %v905 = vld [vmem:[%s6 + $0x24] sm:$0xf]
  %v906 = vld [vmem:[%s6 + $0x28] sm:$0xf]
  %v907 = vld [vmem:[%s6 + $0x2c] sm:$0xf]
  %v908 = vld [vmem:[%s6 + $0x30] sm:$0xf]
  %v909 = vld [vmem:[%s6 + $0x34] sm:$0xf]
  %v910 = vld [vmem:[%s6 + $0x38] sm:$0xf]
  %v911 = vld [vmem:[%s6 + $0x3c] sm:$0xf]
  %v912 = vld [vmem:[%s11] sm:$0x3]
  %v929 = vunpack.c.l.b16 %v896
  %v930 = vunpack.c.l.b16 %v897
  %v931 = vunpack.c.l.b16 %v898
  %v932 = vunpack.c.l.b16 %v899
  %v933 = vunpack.c.l.b16 %v900
  %v934 = vunpack.c.l.b16 %v901
  %v935 = vunpack.c.l.b16 %v902
  %v936 = vunpack.c.l.b16 %v903
  %v937 = vunpack.c.l.b16 %v904
  %v938 = vunpack.c.l.b16 %v905
  %v939 = vunpack.c.l.b16 %v906
  %v940 = vunpack.c.l.b16 %v907
  %v941 = vunpack.c.l.b16 %v908
  %v942 = vunpack.c.l.b16 %v909
  %v943 = vunpack.c.l.b16 %v910
  %v944 = vunpack.c.l.b16 %v911
  %v945 = vpack.c.b16 %v930, %v929
  %v946 = vpack.c.b16 %v932, %v931
  %v947 = vpack.c.b16 %v934, %v933
  %v948 = vpack.c.b16 %v936, %v935
  %v949 = vpack.c.b16 %v938, %v937
  %v950 = vpack.c.b16 %v940, %v939
  %v951 = vpack.c.b16 %v942, %v941
  %v952 = vpack.c.b16 %v944, %v943
  %vm953 = vcmask 31744
  %v955 = vsel %vm953, %v945, 0
  %v958 = vsel %vm953, %v946, 0
  %v961 = vsel %vm953, %v947, 0
  %v964 = vsel %vm953, %v948, 0
  %v967 = vsel %vm953, %v949, 0
  %v970 = vsel %vm953, %v950, 0
  %v973 = vsel %vm953, %v951, 0
  %v976 = vsel %vm953, %v952, 0
  %vm978 = vcmask 1041408
  %v980 = vsel %vm978, %v912, 0
  %982 = vmatprep.subr.bf16.mxu0 0
  %983 = vmatpush1.bf16.msra.mxu0 %v980
  %984 = vmatprep.subr.bf16.mxu0 0
  %985 = vmatpush1.bf16.msra.mxu0 0
  %986 = vmatprep.subr.bf16.mxu0 0
  %987 = vmatpush1.bf16.msra.mxu0 0
  %988 = vmatprep.subr.bf16.mxu0 0
  %989 = vmatpush1.bf16.msra.mxu0 0
  %990 = vmatprep.subr.bf16.mxu0 0
  %991 = vmatpush1.bf16.msra.mxu0 0
  %992 = vmatprep.subr.bf16.mxu0 0
  %993 = vmatpush1.bf16.msra.mxu0 0
  %994 = vmatprep.subr.bf16.mxu0 0
  %995 = vmatpush1.bf16.msra.mxu0 0
  %996 = vmatprep.subr.bf16.mxu0 0
  %997 = vmatpush1.bf16.msra.mxu0 0
  %998 = vmatprep.subr.bf16.mxu0 0
  %999 = vmatpush1.bf16.msra.mxu0 0
  %1000 = vmatprep.subr.bf16.mxu0 0
  %1001 = vmatpush1.bf16.msra.mxu0 0
  %1002 = vmatprep.subr.bf16.mxu0 0
  %1003 = vmatpush1.bf16.msra.mxu0 0
  %1004 = vmatprep.subr.bf16.mxu0 0
  %1005 = vmatpush1.bf16.msra.mxu0 0
  %1006 = vmatprep.subr.bf16.mxu0 0
  %1007 = vmatpush1.bf16.msra.mxu0 0
  %1008 = vmatprep.subr.bf16.mxu0 0
  %1009 = vmatpush1.bf16.msra.mxu0 0
  %1010 = vmatprep.subr.bf16.mxu0 0
  %1011 = vmatpush1.bf16.msra.mxu0 0
  %1012 = vmatprep.subr.bf16.mxu0 0
  %1013 = vmatpush1.bf16.msra.mxu0 0
  %1014 = vmatprep.mubr.bf16.mxu0 0
  %1015 = vmatmul.mubr.bf16.gmra.mrb[0].mxu0 %v955
  %v1016 = vpop.f32.mrb[0].mxu0
  %v1017 = vadd.f32 0.0, %v1016
  %v1018 = vpop.f32.mrb[0].mxu0
  %v1019 = vpop.f32.mrb[0].mxu0
  %v1020 = vadd.f32 0.0, %v1019
  %v1021 = vpop.f32.mrb[0].mxu0
  %1022 = vmatprep.mubr.bf16.mxu0 0
  %1023 = vmatmul.mubr.bf16.gmra.mrb[0].mxu0 %v958
  %v1024 = vpop.f32.mrb[0].mxu0
  %v1025 = vadd.f32 0.0, %v1024
  %v1026 = vpop.f32.mrb[0].mxu0
  %v1027 = vpop.f32.mrb[0].mxu0
  %v1028 = vadd.f32 0.0, %v1027
  %v1029 = vpop.f32.mrb[0].mxu0
  %1030 = vmatprep.mubr.bf16.mxu0 0
  %1031 = vmatmul.mubr.bf16.gmra.mrb[0].mxu0 %v961
  %v1032 = vpop.f32.mrb[0].mxu0
  %v1033 = vadd.f32 0.0, %v1032
  %v1034 = vpop.f32.mrb[0].mxu0
  %v1035 = vpop.f32.mrb[0].mxu0
  %v1036 = vadd.f32 0.0, %v1035
  %v1037 = vpop.f32.mrb[0].mxu0
  %1038 = vmatprep.mubr.bf16.mxu0 0
  %1039 = vmatmul.mubr.bf16.gmra.mrb[0].mxu0 %v964
  %v1040 = vpop.f32.mrb[0].mxu0
  %v1041 = vadd.f32 0.0, %v1040
  %v1042 = vpop.f32.mrb[0].mxu0
  %v1043 = vpop.f32.mrb[0].mxu0
  %v1044 = vadd.f32 0.0, %v1043
  %v1045 = vpop.f32.mrb[0].mxu0
  %1046 = vmatprep.mubr.bf16.mxu0 0
  %1047 = vmatmul.mubr.bf16.gmra.mrb[0].mxu0 %v967
  %v1048 = vpop.f32.mrb[0].mxu0
  %v1049 = vadd.f32 0.0, %v1048
  %v1050 = vpop.f32.mrb[0].mxu0
  %v1051 = vpop.f32.mrb[0].mxu0
  %v1052 = vadd.f32 0.0, %v1051
  %v1053 = vpop.f32.mrb[0].mxu0
  %1054 = vmatprep.mubr.bf16.mxu0 0
  %1055 = vmatmul.mubr.bf16.gmra.mrb[0].mxu0 %v970
  %v1056 = vpop.f32.mrb[0].mxu0
  %v1057 = vadd.f32 0.0, %v1056
  %v1058 = vpop.f32.mrb[0].mxu0
  %v1059 = vpop.f32.mrb[0].mxu0
  %v1060 = vadd.f32 0.0, %v1059
  %v1061 = vpop.f32.mrb[0].mxu0
  %1062 = vmatprep.mubr.bf16.mxu0 0
  %1063 = vmatmul.mubr.bf16.gmra.mrb[0].mxu0 %v973
  %v1064 = vpop.f32.mrb[0].mxu0
  %v1065 = vadd.f32 0.0, %v1064
  %v1066 = vpop.f32.mrb[0].mxu0
  %v1067 = vpop.f32.mrb[0].mxu0
  %v1068 = vadd.f32 0.0, %v1067
  %v1069 = vpop.f32.mrb[0].mxu0
  %1070 = vmatprep.mubr.bf16.mxu0 0
  %1071 = vmatmul.mubr.bf16.gmra.mrb[0].mxu0 %v976
  %v1072 = vpop.f32.mrb[0].mxu0
  %v1073 = vadd.f32 0.0, %v1072
  %v1074 = vpop.f32.mrb[0].mxu0
  %v1075 = vpop.f32.mrb[0].mxu0
  %v1076 = vadd.f32 0.0, %v1075
  %v1077 = vpop.f32.mrb[0].mxu0
  %1078 = vdwg.mxu0
  %v1079 = vmul.f32 %v834, %v1017
  %v1080 = vmul.f32 %v837, %v1020
  %v1081 = vmul.f32 %v842, %v1025
  %v1082 = vmul.f32 %v845, %v1028
  %v1083 = vmul.f32 %v850, %v1033
  %v1084 = vmul.f32 %v853, %v1036
  %v1085 = vmul.f32 %v858, %v1041
  %v1086 = vmul.f32 %v861, %v1044
  %v1087 = vmul.f32 %v866, %v1049
  %v1088 = vmul.f32 %v869, %v1052
  %v1089 = vmul.f32 %v874, %v1057
  %v1090 = vmul.f32 %v877, %v1060
  %v1091 = vmul.f32 %v882, %v1065
  %v1092 = vmul.f32 %v885, %v1068
  %v1093 = vmul.f32 %v890, %v1073
  %v1094 = vmul.f32 %v893, %v1076
  %v1095 = vpack.c.bf16 %v1080, %v1079
  %v1096 = vpack.c.bf16 %v1082, %v1081
  %v1097 = vpack.c.bf16 %v1084, %v1083
  %v1098 = vpack.c.bf16 %v1086, %v1085
  %v1099 = vpack.c.bf16 %v1088, %v1087
  %v1100 = vpack.c.bf16 %v1090, %v1089
  %v1101 = vpack.c.bf16 %v1092, %v1091
  %v1102 = vpack.c.bf16 %v1094, %v1093
  %v1103 = vld [vmem:[%s12] sm:$0xff]
  %v1104 = vld [vmem:[%s12 + $0x8] sm:$0xf]
  %v1105 = vld [vmem:[%s12 + $0xc] sm:$0xff]
  %v1106 = vld [vmem:[%s12 + $0x14] sm:$0xf]
  %v1107 = vld [vmem:[%s12 + $0x18] sm:$0xff]
  %v1108 = vld [vmem:[%s12 + $0x20] sm:$0xf]
  %v1109 = vld [vmem:[%s12 + $0x24] sm:$0xff]
  %v1110 = vld [vmem:[%s12 + $0x2c] sm:$0xf]
  %v1111 = vld [vmem:[%s12 + $0x30] sm:$0xff]
  %v1112 = vld [vmem:[%s12 + $0x38] sm:$0xf]
  %v1123 = vunpack.c.l.b16 %v1103
  %v1124 = vunpack.c.h.b16 %v1103
  %v1125 = vunpack.c.l.b16 %v1104
  %v1126 = vunpack.c.l.b16 %v1105
  %v1127 = vunpack.c.h.b16 %v1105
  %v1128 = vunpack.c.l.b16 %v1106
  %v1129 = vunpack.c.l.b16 %v1107
  %v1130 = vunpack.c.h.b16 %v1107
  %v1131 = vunpack.c.l.b16 %v1108
  %v1132 = vunpack.c.l.b16 %v1109
  %v1133 = vunpack.c.h.b16 %v1109
  %v1134 = vunpack.c.l.b16 %v1110
  %v1135 = vunpack.c.l.b16 %v1111
  %v1136 = vunpack.c.h.b16 %v1111
  %v1137 = vunpack.c.l.b16 %v1112
  %v1138 = vpack.c.b16 %v1126, %v1123
  %v1139 = vpack.c.b16 %v1127, %v1124
  %v1140 = vpack.c.b16 %v1128, %v1125
  %v1141 = vpack.c.b16 %v1132, %v1129
  %v1142 = vpack.c.b16 %v1133, %v1130
  %v1143 = vpack.c.b16 %v1134, %v1131
  %v1144 = vpack.c.b16 %v1135, %v1135
  %v1145 = vpack.c.b16 %v1136, %v1136
  %v1146 = vpack.c.b16 %v1137, %v1137
  %vm1153 = vcmask 326656
  %v1155 = vsel %vm1153, %v1095, 0
  %v1158 = vsel %vm1153, %v1096, 0
  %v1161 = vsel %vm1153, %v1097, 0
  %v1164 = vsel %vm1153, %v1098, 0
  %v1167 = vsel %vm1153, %v1099, 0
  %v1170 = vsel %vm1153, %v1100, 0
  %v1173 = vsel %vm1153, %v1101, 0
  %v1176 = vsel %vm1153, %v1102, 0
  %vm1178 = vcmask 1043456
  %v1180 = vsel %vm1178, %v1144, 0
  %v1183 = vsel %vm1178, %v1145, 0
  %v1186 = vsel %vm1178, %v1146, 0
  %1188 = vmatprep.subr.bf16.mxu0 %v1139
  %1189 = vmatpush1.bf16.msra.mxu0 %v1138
  %1190 = vmatprep.subr.bf16.mxu0 %v1142
  %1191 = vmatpush1.bf16.msra.mxu0 %v1141
  %1192 = vmatprep.subr.bf16.mxu0 %v1183
  %1193 = vmatpush1.bf16.msra.mxu0 %v1180
  %1194 = vmatprep.subr.bf16.mxu0 0
  %1195 = vmatpush1.bf16.msra.mxu0 0
  %1196 = vmatprep.subr.bf16.mxu0 0
  %1197 = vmatpush1.bf16.msra.mxu0 0
  %1198 = vmatprep.subr.bf16.mxu0 0
  %1199 = vmatpush1.bf16.msra.mxu0 0
  %1200 = vmatprep.subr.bf16.mxu0 0
  %1201 = vmatpush1.bf16.msra.mxu0 0
  %1202 = vmatprep.subr.bf16.mxu0 0
  %1203 = vmatpush1.bf16.msra.mxu0 0
  %1204 = vmatprep.subr.bf16.mxu0 0
  %1205 = vmatpush1.bf16.msra.mxu0 0
  %1206 = vmatprep.subr.bf16.mxu0 0
  %1207 = vmatpush1.bf16.msra.mxu0 0
  %1208 = vmatprep.subr.bf16.mxu0 0
  %1209 = vmatpush1.bf16.msra.mxu0 0
  %1210 = vmatprep.subr.bf16.mxu0 0
  %1211 = vmatpush1.bf16.msra.mxu0 0
  %1212 = vmatprep.subr.bf16.mxu0 0
  %1213 = vmatpush1.bf16.msra.mxu0 0
  %1214 = vmatprep.subr.bf16.mxu0 0
  %1215 = vmatpush1.bf16.msra.mxu0 0
  %1216 = vmatprep.subr.bf16.mxu0 0
  %1217 = vmatpush1.bf16.msra.mxu0 0
  %1218 = vmatprep.subr.bf16.mxu0 0
  %1219 = vmatpush1.bf16.msra.mxu0 0
  %1220 = vmatprep.mubr.bf16.mxu0 0
  %1221 = vmatmul.mubr.bf16.gmra.mrb[0].mxu0 %v1155
  %v1222 = vpop.f32.mrb[0].mxu0
  %v1223 = vadd.f32 0.0, %v1222
  %v1224 = vpop.f32.mrb[0].mxu0
  %v1225 = vadd.f32 0.0, %v1224
  %v1226 = vpop.f32.mrb[0].mxu0
  %v1227 = vadd.f32 0.0, %v1226
  %v1228 = vpop.f32.mrb[0].mxu0
  %v1229 = vadd.f32 0.0, %v1228
  %1230 = vmatprep.mubr.bf16.mxu0 0
  %1231 = vmatmul.mubr.bf16.gmra.mrb[0].mxu0 %v1158
  %v1232 = vpop.f32.mrb[0].mxu0
  %v1233 = vadd.f32 0.0, %v1232
  %v1234 = vpop.f32.mrb[0].mxu0
  %v1235 = vadd.f32 0.0, %v1234
  %v1236 = vpop.f32.mrb[0].mxu0
  %v1237 = vadd.f32 0.0, %v1236
  %v1238 = vpop.f32.mrb[0].mxu0
  %v1239 = vadd.f32 0.0, %v1238
  %1240 = vmatprep.mubr.bf16.mxu0 0
  %1241 = vmatmul.mubr.bf16.gmra.mrb[0].mxu0 %v1161
  %v1242 = vpop.f32.mrb[0].mxu0
  %v1243 = vadd.f32 0.0, %v1242
  %v1244 = vpop.f32.mrb[0].mxu0
  %v1245 = vadd.f32 0.0, %v1244
  %v1246 = vpop.f32.mrb[0].mxu0
  %v1247 = vadd.f32 0.0, %v1246
  %v1248 = vpop.f32.mrb[0].mxu0
  %v1249 = vadd.f32 0.0, %v1248
  %1250 = vmatprep.mubr.bf16.mxu0 0
  %1251 = vmatmul.mubr.bf16.gmra.mrb[0].mxu0 %v1164
  %v1252 = vpop.f32.mrb[0].mxu0
  %v1253 = vadd.f32 0.0, %v1252
  %v1254 = vpop.f32.mrb[0].mxu0
  %v1255 = vadd.f32 0.0, %v1254
  %v1256 = vpop.f32.mrb[0].mxu0
  %v1257 = vadd.f32 0.0, %v1256
  %v1258 = vpop.f32.mrb[0].mxu0
  %v1259 = vadd.f32 0.0, %v1258
  %1260 = vmatprep.mubr.bf16.mxu0 0
  %1261 = vmatmul.mubr.bf16.gmra.mrb[0].mxu0 %v1167
  %v1262 = vpop.f32.mrb[0].mxu0
  %v1263 = vadd.f32 0.0, %v1262
  %v1264 = vpop.f32.mrb[0].mxu0
  %v1265 = vadd.f32 0.0, %v1264
  %v1266 = vpop.f32.mrb[0].mxu0
  %v1267 = vadd.f32 0.0, %v1266
  %v1268 = vpop.f32.mrb[0].mxu0
  %v1269 = vadd.f32 0.0, %v1268
  %1270 = vmatprep.mubr.bf16.mxu0 0
  %1271 = vmatmul.mubr.bf16.gmra.mrb[0].mxu0 %v1170
  %v1272 = vpop.f32.mrb[0].mxu0
  %v1273 = vadd.f32 0.0, %v1272
  %v1274 = vpop.f32.mrb[0].mxu0
  %v1275 = vadd.f32 0.0, %v1274
  %v1276 = vpop.f32.mrb[0].mxu0
  %v1277 = vadd.f32 0.0, %v1276
  %v1278 = vpop.f32.mrb[0].mxu0
  %v1279 = vadd.f32 0.0, %v1278
  %1280 = vmatprep.mubr.bf16.mxu0 0
  %1281 = vmatmul.mubr.bf16.gmra.mrb[0].mxu0 %v1173
  %v1282 = vpop.f32.mrb[0].mxu0
  %v1283 = vadd.f32 0.0, %v1282
  %v1284 = vpop.f32.mrb[0].mxu0
  %v1285 = vadd.f32 0.0, %v1284
  %v1286 = vpop.f32.mrb[0].mxu0
  %v1287 = vadd.f32 0.0, %v1286
  %v1288 = vpop.f32.mrb[0].mxu0
  %v1289 = vadd.f32 0.0, %v1288
  %1290 = vmatprep.mubr.bf16.mxu0 0
  %1291 = vmatmul.mubr.bf16.gmra.mrb[0].mxu0 %v1176
  %v1292 = vpop.f32.mrb[0].mxu0
  %v1293 = vadd.f32 0.0, %v1292
  %v1294 = vpop.f32.mrb[0].mxu0
  %v1295 = vadd.f32 0.0, %v1294
  %v1296 = vpop.f32.mrb[0].mxu0
  %v1297 = vadd.f32 0.0, %v1296
  %v1298 = vpop.f32.mrb[0].mxu0
  %v1299 = vadd.f32 0.0, %v1298
  %1300 = vdwg.mxu0
  %1301 = vmatprep.subr.bf16.mxu0 0
  %1302 = vmatpush1.bf16.msra.mxu0 %v1140
  %1303 = vmatprep.subr.bf16.mxu0 0
  %1304 = vmatpush1.bf16.msra.mxu0 %v1143
  %1305 = vmatprep.subr.bf16.mxu0 0
  %1306 = vmatpush1.bf16.msra.mxu0 %v1186
  %1307 = vmatprep.subr.bf16.mxu0 0
  %1308 = vmatpush1.bf16.msra.mxu0 0
  %1309 = vmatprep.subr.bf16.mxu0 0
  %1310 = vmatpush1.bf16.msra.mxu0 0
  %1311 = vmatprep.subr.bf16.mxu0 0
  %1312 = vmatpush1.bf16.msra.mxu0 0
  %1313 = vmatprep.subr.bf16.mxu0 0
  %1314 = vmatpush1.bf16.msra.mxu0 0
  %1315 = vmatprep.subr.bf16.mxu0 0
  %1316 = vmatpush1.bf16.msra.mxu0 0
  %1317 = vmatprep.subr.bf16.mxu0 0
  %1318 = vmatpush1.bf16.msra.mxu0 0
  %1319 = vmatprep.subr.bf16.mxu0 0
  %1320 = vmatpush1.bf16.msra.mxu0 0
  %1321 = vmatprep.subr.bf16.mxu0 0
  %1322 = vmatpush1.bf16.msra.mxu0 0
  %1323 = vmatprep.subr.bf16.mxu0 0
  %1324 = vmatpush1.bf16.msra.mxu0 0
  %1325 = vmatprep.subr.bf16.mxu0 0
  %1326 = vmatpush1.bf16.msra.mxu0 0
  %1327 = vmatprep.subr.bf16.mxu0 0
  %1328 = vmatpush1.bf16.msra.mxu0 0
  %1329 = vmatprep.subr.bf16.mxu0 0
  %1330 = vmatpush1.bf16.msra.mxu0 0
  %1331 = vmatprep.subr.bf16.mxu0 0
  %1332 = vmatpush1.bf16.msra.mxu0 0
  %1333 = vmatprep.mubr.bf16.mxu0 0
  %1334 = vmatmul.mubr.bf16.gmra.mrb[0].mxu0 %v1155
  %v1335 = vpop.f32.mrb[0].mxu0
  %v1336 = vadd.f32 0.0, %v1335
  %v1337 = vpop.f32.mrb[0].mxu0
  %v1338 = vpop.f32.mrb[0].mxu0
  %v1339 = vadd.f32 0.0, %v1338
  %v1340 = vpop.f32.mrb[0].mxu0
  %1341 = vmatprep.mubr.bf16.mxu0 0
  %1342 = vmatmul.mubr.bf16.gmra.mrb[0].mxu0 %v1158
  %v1343 = vpop.f32.mrb[0].mxu0
  %v1344 = vadd.f32 0.0, %v1343
  %v1345 = vpop.f32.mrb[0].mxu0
  %v1346 = vpop.f32.mrb[0].mxu0
  %v1347 = vadd.f32 0.0, %v1346
  %v1348 = vpop.f32.mrb[0].mxu0
  %1349 = vmatprep.mubr.bf16.mxu0 0
  %1350 = vmatmul.mubr.bf16.gmra.mrb[0].mxu0 %v1161
  %v1351 = vpop.f32.mrb[0].mxu0
  %v1352 = vadd.f32 0.0, %v1351
  %v1353 = vpop.f32.mrb[0].mxu0
  %v1354 = vpop.f32.mrb[0].mxu0
  %v1355 = vadd.f32 0.0, %v1354
  %v1356 = vpop.f32.mrb[0].mxu0
  %1357 = vmatprep.mubr.bf16.mxu0 0
  %1358 = vmatmul.mubr.bf16.gmra.mrb[0].mxu0 %v1164
  %v1359 = vpop.f32.mrb[0].mxu0
  %v1360 = vadd.f32 0.0, %v1359
  %v1361 = vpop.f32.mrb[0].mxu0
  %v1362 = vpop.f32.mrb[0].mxu0
  %v1363 = vadd.f32 0.0, %v1362
  %v1364 = vpop.f32.mrb[0].mxu0
  %1365 = vmatprep.mubr.bf16.mxu0 0
  %1366 = vmatmul.mubr.bf16.gmra.mrb[0].mxu0 %v1167
  %v1367 = vpop.f32.mrb[0].mxu0
  %v1368 = vadd.f32 0.0, %v1367
  %v1369 = vpop.f32.mrb[0].mxu0
  %v1370 = vpop.f32.mrb[0].mxu0
  %v1371 = vadd.f32 0.0, %v1370
  %v1372 = vpop.f32.mrb[0].mxu0
  %1373 = vmatprep.mubr.bf16.mxu0 0
  %1374 = vmatmul.mubr.bf16.gmra.mrb[0].mxu0 %v1170
  %v1375 = vpop.f32.mrb[0].mxu0
  %v1376 = vadd.f32 0.0, %v1375
  %v1377 = vpop.f32.mrb[0].mxu0
  %v1378 = vpop.f32.mrb[0].mxu0
  %v1379 = vadd.f32 0.0, %v1378
  %v1380 = vpop.f32.mrb[0].mxu0
  %1381 = vmatprep.mubr.bf16.mxu0 0
  %1382 = vmatmul.mubr.bf16.gmra.mrb[0].mxu0 %v1173
  %v1383 = vpop.f32.mrb[0].mxu0
  %v1384 = vadd.f32 0.0, %v1383
  %v1385 = vpop.f32.mrb[0].mxu0
  %v1386 = vpop.f32.mrb[0].mxu0
  %v1387 = vadd.f32 0.0, %v1386
  %v1388 = vpop.f32.mrb[0].mxu0
  %1389 = vmatprep.mubr.bf16.mxu0 0
  %1390 = vmatmul.mubr.bf16.gmra.mrb[0].mxu0 %v1176
  %v1391 = vpop.f32.mrb[0].mxu0
  %v1392 = vadd.f32 0.0, %v1391
  %v1393 = vpop.f32.mrb[0].mxu0
  %v1394 = vpop.f32.mrb[0].mxu0
  %v1395 = vadd.f32 0.0, %v1394
  %v1396 = vpop.f32.mrb[0].mxu0
  %1397 = vdwg.mxu0
  %v1398 = vmul.f32 %v370, %v1223
  %v1399 = vmul.f32 %v372, %v1225
  %v1400 = vmul.f32 %v483, %v1336
  %v1401 = vmul.f32 %v374, %v1227
  %v1402 = vmul.f32 %v376, %v1229
  %v1403 = vmul.f32 %v486, %v1339
  %v1404 = vmul.f32 %v380, %v1233
  %v1405 = vmul.f32 %v382, %v1235
  %v1406 = vmul.f32 %v491, %v1344
  %v1407 = vmul.f32 %v384, %v1237
  %v1408 = vmul.f32 %v386, %v1239
  %v1409 = vmul.f32 %v494, %v1347
  %v1410 = vmul.f32 %v390, %v1243
  %v1411 = vmul.f32 %v392, %v1245
  %v1412 = vmul.f32 %v499, %v1352
  %v1413 = vmul.f32 %v394, %v1247
  %v1414 = vmul.f32 %v396, %v1249
  %v1415 = vmul.f32 %v502, %v1355
  %v1416 = vmul.f32 %v400, %v1253
  %v1417 = vmul.f32 %v402, %v1255
  %v1418 = vmul.f32 %v507, %v1360
  %v1419 = vmul.f32 %v404, %v1257
  %v1420 = vmul.f32 %v406, %v1259
  %v1421 = vmul.f32 %v510, %v1363
  %v1422 = vmul.f32 %v410, %v1263
  %v1423 = vmul.f32 %v412, %v1265
  %v1424 = vmul.f32 %v515, %v1368
  %v1425 = vmul.f32 %v414, %v1267
  %v1426 = vmul.f32 %v416, %v1269
  %v1427 = vmul.f32 %v518, %v1371
  %v1428 = vmul.f32 %v420, %v1273
  %v1429 = vmul.f32 %v422, %v1275
  %v1430 = vmul.f32 %v523, %v1376
  %v1431 = vmul.f32 %v424, %v1277
  %v1432 = vmul.f32 %v426, %v1279
  %v1433 = vmul.f32 %v526, %v1379
  %v1434 = vmul.f32 %v430, %v1283
  %v1435 = vmul.f32 %v432, %v1285
  %v1436 = vmul.f32 %v531, %v1384
  %v1437 = vmul.f32 %v434, %v1287
  %v1438 = vmul.f32 %v436, %v1289
  %v1439 = vmul.f32 %v534, %v1387
  %v1440 = vmul.f32 %v440, %v1293
  %v1441 = vmul.f32 %v442, %v1295
  %v1442 = vmul.f32 %v539, %v1392
  %v1443 = vmul.f32 %v444, %v1297
  %v1444 = vmul.f32 %v446, %v1299
  %v1445 = vmul.f32 %v542, %v1395
  %v1446 = vpack.c.bf16 %v1401, %v1398
  %v1447 = vpack.c.bf16 %v1402, %v1399
  %v1448 = vpack.c.bf16 %v1403, %v1400
  %v1449 = vpack.c.bf16 %v1407, %v1404
  %v1450 = vpack.c.bf16 %v1408, %v1405
  %v1451 = vpack.c.bf16 %v1409, %v1406
  %v1452 = vpack.c.bf16 %v1413, %v1410
  %v1453 = vpack.c.bf16 %v1414, %v1411
  %v1454 = vpack.c.bf16 %v1415, %v1412
  %v1455 = vpack.c.bf16 %v1419, %v1416
  %v1456 = vpack.c.bf16 %v1420, %v1417
  %v1457 = vpack.c.bf16 %v1421, %v1418
  %v1458 = vpack.c.bf16 %v1425, %v1422
  %v1459 = vpack.c.bf16 %v1426, %v1423
  %v1460 = vpack.c.bf16 %v1427, %v1424
  %v1461 = vpack.c.bf16 %v1431, %v1428
  %v1462 = vpack.c.bf16 %v1432, %v1429
  %v1463 = vpack.c.bf16 %v1433, %v1430
  %v1464 = vpack.c.bf16 %v1437, %v1434
  %v1465 = vpack.c.bf16 %v1438, %v1435
  %v1466 = vpack.c.bf16 %v1439, %v1436
  %v1467 = vpack.c.bf16 %v1443, %v1440
  %v1468 = vpack.c.bf16 %v1444, %v1441
  %v1469 = vpack.c.bf16 %v1445, %v1442
  %v1470 = vld [vmem:[%s13] sm:$0xf]
  %v1471 = vld [vmem:[%s13 + $0x4] sm:$0xf]
  %v1472 = vld [vmem:[%s13 + $0x8] sm:$0xf]
  %v1473 = vld [vmem:[%s13 + $0xc] sm:$0xf]
  %v1474 = vld [vmem:[%s13 + $0x10] sm:$0xf]
  %v1475 = vld [vmem:[%s13 + $0x14] sm:$0xf]
  %v1476 = vld [vmem:[%s13 + $0x18] sm:$0xf]
  %v1477 = vld [vmem:[%s13 + $0x1c] sm:$0xf]
  %v1478 = vld [vmem:[%s13 + $0x20] sm:$0xf]
  %v1479 = vld [vmem:[%s13 + $0x24] sm:$0xf]
  %v1480 = vld [vmem:[%s13 + $0x28] sm:$0xf]
  %v1481 = vld [vmem:[%s13 + $0x2c] sm:$0xf]
  %v1482 = vld [vmem:[%s13 + $0x30] sm:$0xf]
  %v1483 = vld [vmem:[%s13 + $0x34] sm:$0xf]
  %v1484 = vld [vmem:[%s13 + $0x38] sm:$0xf]
  %v1485 = vld [vmem:[%s13 + $0x3c] sm:$0xf]
  %v1486 = vld [vmem:[%s13 + $0x40] sm:$0xf]
  %v1487 = vld [vmem:[%s13 + $0x44] sm:$0xf]
  %v1488 = vld [vmem:[%s13 + $0x48] sm:$0xf]
  %v1489 = vld [vmem:[%s13 + $0x4c] sm:$0xf]
  %v1490 = vld [vmem:[%s13 + $0x50] sm:$0xf]
  %v1491 = vld [vmem:[%s13 + $0x54] sm:$0xf]
  %v1492 = vld [vmem:[%s13 + $0x58] sm:$0xf]
  %v1493 = vld [vmem:[%s13 + $0x5c] sm:$0xf]
  %v1494 = vld [vmem:[%s13 + $0x60] sm:$0xf]
  %v1495 = vld [vmem:[%s13 + $0x64] sm:$0xf]
  %v1496 = vld [vmem:[%s13 + $0x68] sm:$0xf]
  %v1497 = vld [vmem:[%s13 + $0x6c] sm:$0xf]
  %v1498 = vld [vmem:[%s13 + $0x70] sm:$0xf]
  %v1499 = vld [vmem:[%s13 + $0x74] sm:$0xf]
  %v1500 = vld [vmem:[%s13 + $0x78] sm:$0xf]
  %v1501 = vld [vmem:[%s13 + $0x7c] sm:$0xf]
  %v1502 = vld [vmem:[%s13 + $0x80] sm:$0xf]
  %v1503 = vld [vmem:[%s13 + $0x84] sm:$0xf]
  %v1504 = vld [vmem:[%s13 + $0x88] sm:$0xf]
  %v1505 = vld [vmem:[%s13 + $0x8c] sm:$0xf]
  %v1506 = vld [vmem:[%s13 + $0x90] sm:$0xf]
  %v1507 = vld [vmem:[%s13 + $0x94] sm:$0xf]
  %v1508 = vld [vmem:[%s13 + $0x98] sm:$0xf]
  %v1509 = vld [vmem:[%s13 + $0x9c] sm:$0xf]
  %v1510 = vld [vmem:[%s13 + $0xa0] sm:$0xf]
  %v1511 = vld [vmem:[%s13 + $0xa4] sm:$0xf]
  %v1512 = vld [vmem:[%s13 + $0xa8] sm:$0xf]
  %v1513 = vld [vmem:[%s13 + $0xac] sm:$0xf]
  %v1514 = vld [vmem:[%s13 + $0xb0] sm:$0xf]
  %v1560 = vunpack.c.l.b16 %v1470
  %v1561 = vunpack.c.l.b16 %v1471
  %v1562 = vunpack.c.l.b16 %v1472
  %v1563 = vunpack.c.l.b16 %v1473
  %v1564 = vunpack.c.l.b16 %v1474
  %v1565 = vunpack.c.l.b16 %v1475
  %v1566 = vunpack.c.l.b16 %v1476
  %v1567 = vunpack.c.l.b16 %v1477
  %v1568 = vunpack.c.l.b16 %v1478
  %v1569 = vunpack.c.l.b16 %v1479
  %v1570 = vunpack.c.l.b16 %v1480
  %v1571 = vunpack.c.l.b16 %v1481
  %v1572 = vunpack.c.l.b16 %v1482
  %v1573 = vunpack.c.l.b16 %v1483
  %v1574 = vunpack.c.l.b16 %v1484
  %v1575 = vunpack.c.l.b16 %v1485
  %v1576 = vunpack.c.l.b16 %v1486
  %v1577 = vunpack.c.l.b16 %v1487
  %v1578 = vunpack.c.l.b16 %v1488
  %v1579 = vunpack.c.l.b16 %v1489
  %v1580 = vunpack.c.l.b16 %v1490
  %v1581 = vunpack.c.l.b16 %v1491
  %v1582 = vunpack.c.l.b16 %v1492
  %v1583 = vunpack.c.l.b16 %v1493
  %v1584 = vunpack.c.l.b16 %v1494
  %v1585 = vunpack.c.l.b16 %v1495
  %v1586 = vunpack.c.l.b16 %v1496
  %v1587 = vunpack.c.l.b16 %v1497
  %v1588 = vunpack.c.l.b16 %v1498
  %v1589 = vunpack.c.l.b16 %v1499
  %v1590 = vunpack.c.l.b16 %v1500
  %v1591 = vunpack.c.l.b16 %v1501
  %v1592 = vunpack.c.l.b16 %v1502
  %v1593 = vunpack.c.l.b16 %v1503
  %v1594 = vunpack.c.l.b16 %v1504
  %v1595 = vunpack.c.l.b16 %v1505
  %v1596 = vunpack.c.l.b16 %v1506
  %v1597 = vunpack.c.l.b16 %v1507
  %v1598 = vunpack.c.l.b16 %v1508
  %v1599 = vunpack.c.l.b16 %v1509
  %v1600 = vunpack.c.l.b16 %v1510
  %v1601 = vunpack.c.l.b16 %v1511
  %v1602 = vunpack.c.l.b16 %v1512
  %v1603 = vunpack.c.l.b16 %v1513
  %v1604 = vunpack.c.l.b16 %v1514
  %v1605 = vpack.c.b16 %v1561, %v1560
  %v1606 = vpack.c.b16 %v1563, %v1562
  %v1607 = vpack.c.b16 %v1565, %v1564
  %v1608 = vpack.c.b16 %v1567, %v1566
  %v1609 = vpack.c.b16 %v1569, %v1568
  %v1610 = vpack.c.b16 %v1571, %v1570
  %v1611 = vpack.c.b16 %v1573, %v1572
  %v1612 = vpack.c.b16 %v1575, %v1574
  %v1613 = vpack.c.b16 %v1577, %v1576
  %v1614 = vpack.c.b16 %v1579, %v1578
  %v1615 = vpack.c.b16 %v1581, %v1580
  %v1616 = vpack.c.b16 %v1583, %v1582
  %v1617 = vpack.c.b16 %v1585, %v1584
  %v1618 = vpack.c.b16 %v1587, %v1586
  %v1619 = vpack.c.b16 %v1589, %v1588
  %v1620 = vpack.c.b16 %v1591, %v1590
  %v1621 = vpack.c.b16 %v1593, %v1592
  %v1622 = vpack.c.b16 %v1595, %v1594
  %v1623 = vpack.c.b16 %v1597, %v1596
  %v1624 = vpack.c.b16 %v1599, %v1598
  %v1625 = vpack.c.b16 %v1601, %v1600
  %v1626 = vpack.c.b16 %v1603, %v1602
  %v1627 = vpack.c.b16 %v1604, %v1604
  %vm1650 = vcmask 850944
  %v1652 = vsel %vm1650, %v1448, 0
  %v1655 = vsel %vm1650, %v1451, 0
  %v1658 = vsel %vm1650, %v1454, 0
  %v1661 = vsel %vm1650, %v1457, 0
  %v1664 = vsel %vm1650, %v1460, 0
  %v1667 = vsel %vm1650, %v1463, 0
  %v1670 = vsel %vm1650, %v1466, 0
  %v1673 = vsel %vm1650, %v1469, 0
  %v1676 = vsel %vm1178, %v1627, 0
  %1678 = vmatprep.subr.bf16.mxu0 0
  %1679 = vmatpush1.bf16.msra.mxu0 %v1605
  %1680 = vmatprep.subr.bf16.mxu0 0
  %1681 = vmatpush1.bf16.msra.mxu0 %v1606
  %1682 = vmatprep.subr.bf16.mxu0 0
  %1683 = vmatpush1.bf16.msra.mxu0 %v1607
  %1684 = vmatprep.subr.bf16.mxu0 0
  %1685 = vmatpush1.bf16.msra.mxu0 %v1608
  %1686 = vmatprep.subr.bf16.mxu0 0
  %1687 = vmatpush1.bf16.msra.mxu0 %v1609
  %1688 = vmatprep.subr.bf16.mxu0 0
  %1689 = vmatpush1.bf16.msra.mxu0 %v1610
  %1690 = vmatprep.subr.bf16.mxu0 0
  %1691 = vmatpush1.bf16.msra.mxu0 %v1611
  %1692 = vmatprep.subr.bf16.mxu0 0
  %1693 = vmatpush1.bf16.msra.mxu0 %v1612
  %1694 = vmatprep.subr.bf16.mxu0 0
  %1695 = vmatpush1.bf16.msra.mxu0 %v1613
  %1696 = vmatprep.subr.bf16.mxu0 0
  %1697 = vmatpush1.bf16.msra.mxu0 %v1614
  %1698 = vmatprep.subr.bf16.mxu0 0
  %1699 = vmatpush1.bf16.msra.mxu0 %v1615
  %1700 = vmatprep.subr.bf16.mxu0 0
  %1701 = vmatpush1.bf16.msra.mxu0 %v1616
  %1702 = vmatprep.subr.bf16.mxu0 0
  %1703 = vmatpush1.bf16.msra.mxu0 %v1617
  %1704 = vmatprep.subr.bf16.mxu0 0
  %1705 = vmatpush1.bf16.msra.mxu0 %v1618
  %1706 = vmatprep.subr.bf16.mxu0 0
  %1707 = vmatpush1.bf16.msra.mxu0 %v1619
  %1708 = vmatprep.subr.bf16.mxu0 0
  %1709 = vmatpush1.bf16.msra.mxu0 %v1620
  %1710 = vmatprep.mubr.bf16.mxu0 %v1447
  %1711 = vmatmul.mubr.bf16.gmra.mrb[0].mxu0 %v1446
  %v1712 = vpop.f32.mrb[0].mxu0
  %v1713 = vadd.f32 0.0, %v1712
  %v1714 = vpop.f32.mrb[0].mxu0
  %v1715 = vpop.f32.mrb[0].mxu0
  %v1716 = vadd.f32 0.0, %v1715
  %v1717 = vpop.f32.mrb[0].mxu0
  %1718 = vmatprep.mubr.bf16.mxu0 %v1450
  %1719 = vmatmul.mubr.bf16.gmra.mrb[0].mxu0 %v1449
  %v1720 = vpop.f32.mrb[0].mxu0
  %v1721 = vadd.f32 0.0, %v1720
  %v1722 = vpop.f32.mrb[0].mxu0
  %v1723 = vpop.f32.mrb[0].mxu0
  %v1724 = vadd.f32 0.0, %v1723
  %v1725 = vpop.f32.mrb[0].mxu0
  %1726 = vmatprep.mubr.bf16.mxu0 %v1453
  %1727 = vmatmul.mubr.bf16.gmra.mrb[0].mxu0 %v1452
  %v1728 = vpop.f32.mrb[0].mxu0
  %v1729 = vadd.f32 0.0, %v1728
  %v1730 = vpop.f32.mrb[0].mxu0
  %v1731 = vpop.f32.mrb[0].mxu0
  %v1732 = vadd.f32 0.0, %v1731
  %v1733 = vpop.f32.mrb[0].mxu0
  %1734 = vmatprep.mubr.bf16.mxu0 %v1456
  %1735 = vmatmul.mubr.bf16.gmra.mrb[0].mxu0 %v1455
  %v1736 = vpop.f32.mrb[0].mxu0
  %v1737 = vadd.f32 0.0, %v1736
  %v1738 = vpop.f32.mrb[0].mxu0
  %v1739 = vpop.f32.mrb[0].mxu0
  %v1740 = vadd.f32 0.0, %v1739
  %v1741 = vpop.f32.mrb[0].mxu0
  %1742 = vmatprep.mubr.bf16.mxu0 %v1459
  %1743 = vmatmul.mubr.bf16.gmra.mrb[0].mxu0 %v1458
  %v1744 = vpop.f32.mrb[0].mxu0
  %v1745 = vadd.f32 0.0, %v1744
  %v1746 = vpop.f32.mrb[0].mxu0
  %v1747 = vpop.f32.mrb[0].mxu0
  %v1748 = vadd.f32 0.0, %v1747
  %v1749 = vpop.f32.mrb[0].mxu0
  %1750 = vmatprep.mubr.bf16.mxu0 %v1462
  %1751 = vmatmul.mubr.bf16.gmra.mrb[0].mxu0 %v1461
  %v1752 = vpop.f32.mrb[0].mxu0
  %v1753 = vadd.f32 0.0, %v1752
  %v1754 = vpop.f32.mrb[0].mxu0
  %v1755 = vpop.f32.mrb[0].mxu0
  %v1756 = vadd.f32 0.0, %v1755
  %v1757 = vpop.f32.mrb[0].mxu0
  %1758 = vmatprep.mubr.bf16.mxu0 %v1465
  %1759 = vmatmul.mubr.bf16.gmra.mrb[0].mxu0 %v1464
  %v1760 = vpop.f32.mrb[0].mxu0
  %v1761 = vadd.f32 0.0, %v1760
  %v1762 = vpop.f32.mrb[0].mxu0
  %v1763 = vpop.f32.mrb[0].mxu0
  %v1764 = vadd.f32 0.0, %v1763
  %v1765 = vpop.f32.mrb[0].mxu0
  %1766 = vmatprep.mubr.bf16.mxu0 %v1468
  %1767 = vmatmul.mubr.bf16.gmra.mrb[0].mxu0 %v1467
  %v1768 = vpop.f32.mrb[0].mxu0
  %v1769 = vadd.f32 0.0, %v1768
  %v1770 = vpop.f32.mrb[0].mxu0
  %v1771 = vpop.f32.mrb[0].mxu0
  %v1772 = vadd.f32 0.0, %v1771
  %v1773 = vpop.f32.mrb[0].mxu0
  %1774 = vdwg.mxu0
  %1775 = vmatprep.subr.bf16.mxu0 0
  %1776 = vmatpush1.bf16.msra.mxu0 %v1621
  %1777 = vmatprep.subr.bf16.mxu0 0
  %1778 = vmatpush1.bf16.msra.mxu0 %v1622
  %1779 = vmatprep.subr.bf16.mxu0 0
  %1780 = vmatpush1.bf16.msra.mxu0 %v1623
  %1781 = vmatprep.subr.bf16.mxu0 0
  %1782 = vmatpush1.bf16.msra.mxu0 %v1624
  %1783 = vmatprep.subr.bf16.mxu0 0
  %1784 = vmatpush1.bf16.msra.mxu0 %v1625
  %1785 = vmatprep.subr.bf16.mxu0 0
  %1786 = vmatpush1.bf16.msra.mxu0 %v1626
  %1787 = vmatprep.subr.bf16.mxu0 0
  %1788 = vmatpush1.bf16.msra.mxu0 %v1676
  %1789 = vmatprep.subr.bf16.mxu0 0
  %1790 = vmatpush1.bf16.msra.mxu0 0
  %1791 = vmatprep.subr.bf16.mxu0 0
  %1792 = vmatpush1.bf16.msra.mxu0 0
  %1793 = vmatprep.subr.bf16.mxu0 0
  %1794 = vmatpush1.bf16.msra.mxu0 0
  %1795 = vmatprep.subr.bf16.mxu0 0
  %1796 = vmatpush1.bf16.msra.mxu0 0
  %1797 = vmatprep.subr.bf16.mxu0 0
  %1798 = vmatpush1.bf16.msra.mxu0 0
  %1799 = vmatprep.subr.bf16.mxu0 0
  %1800 = vmatpush1.bf16.msra.mxu0 0
  %1801 = vmatprep.subr.bf16.mxu0 0
  %1802 = vmatpush1.bf16.msra.mxu0 0
  %1803 = vmatprep.subr.bf16.mxu0 0
  %1804 = vmatpush1.bf16.msra.mxu0 0
  %1805 = vmatprep.subr.bf16.mxu0 0
  %1806 = vmatpush1.bf16.msra.mxu0 0
  %1807 = vmatprep.mubr.bf16.mxu0 0
  %1808 = vmatmul.mubr.bf16.gmra.mrb[0].mxu0 %v1652
  %v1809 = vpop.f32.mrb[0].mxu0
  %v1810 = vadd.f32 %v1713, %v1809
  %v1811 = vpop.f32.mrb[0].mxu0
  %v1812 = vpop.f32.mrb[0].mxu0
  %v1813 = vadd.f32 %v1716, %v1812
  %v1814 = vpop.f32.mrb[0].mxu0
  %1815 = vmatprep.mubr.bf16.mxu0 0
  %1816 = vmatmul.mubr.bf16.gmra.mrb[0].mxu0 %v1655
  %v1817 = vpop.f32.mrb[0].mxu0
  %v1818 = vadd.f32 %v1721, %v1817
  %v1819 = vpop.f32.mrb[0].mxu0
  %v1820 = vpop.f32.mrb[0].mxu0
  %v1821 = vadd.f32 %v1724, %v1820
  %v1822 = vpop.f32.mrb[0].mxu0
  %1823 = vmatprep.mubr.bf16.mxu0 0
  %1824 = vmatmul.mubr.bf16.gmra.mrb[0].mxu0 %v1658
  %v1825 = vpop.f32.mrb[0].mxu0
  %v1826 = vadd.f32 %v1729, %v1825
  %v1827 = vpop.f32.mrb[0].mxu0
  %v1828 = vpop.f32.mrb[0].mxu0
  %v1829 = vadd.f32 %v1732, %v1828
  %v1830 = vpop.f32.mrb[0].mxu0
  %1831 = vmatprep.mubr.bf16.mxu0 0
  %1832 = vmatmul.mubr.bf16.gmra.mrb[0].mxu0 %v1661
  %v1833 = vpop.f32.mrb[0].mxu0
  %v1834 = vadd.f32 %v1737, %v1833
  %v1835 = vpop.f32.mrb[0].mxu0
  %v1836 = vpop.f32.mrb[0].mxu0
  %v1837 = vadd.f32 %v1740, %v1836
  %v1838 = vpop.f32.mrb[0].mxu0
  %1839 = vmatprep.mubr.bf16.mxu0 0
  %1840 = vmatmul.mubr.bf16.gmra.mrb[0].mxu0 %v1664
  %v1841 = vpop.f32.mrb[0].mxu0
  %v1842 = vadd.f32 %v1745, %v1841
  %v1843 = vpop.f32.mrb[0].mxu0
  %v1844 = vpop.f32.mrb[0].mxu0
  %v1845 = vadd.f32 %v1748, %v1844
  %v1846 = vpop.f32.mrb[0].mxu0
  %1847 = vmatprep.mubr.bf16.mxu0 0
  %1848 = vmatmul.mubr.bf16.gmra.mrb[0].mxu0 %v1667
  %v1849 = vpop.f32.mrb[0].mxu0
  %v1850 = vadd.f32 %v1753, %v1849
  %v1851 = vpop.f32.mrb[0].mxu0
  %v1852 = vpop.f32.mrb[0].mxu0
  %v1853 = vadd.f32 %v1756, %v1852
  %v1854 = vpop.f32.mrb[0].mxu0
  %1855 = vmatprep.mubr.bf16.mxu0 0
  %1856 = vmatmul.mubr.bf16.gmra.mrb[0].mxu0 %v1670
  %v1857 = vpop.f32.mrb[0].mxu0
  %v1858 = vadd.f32 %v1761, %v1857
  %v1859 = vpop.f32.mrb[0].mxu0
  %v1860 = vpop.f32.mrb[0].mxu0
  %v1861 = vadd.f32 %v1764, %v1860
  %v1862 = vpop.f32.mrb[0].mxu0
  %1863 = vmatprep.mubr.bf16.mxu0 0
  %1864 = vmatmul.mubr.bf16.gmra.mrb[0].mxu0 %v1673
  %v1865 = vpop.f32.mrb[0].mxu0
  %v1866 = vadd.f32 %v1769, %v1865
  %v1867 = vpop.f32.mrb[0].mxu0
  %v1868 = vpop.f32.mrb[0].mxu0
  %v1869 = vadd.f32 %v1772, %v1868
  %v1870 = vpop.f32.mrb[0].mxu0
  %1871 = vdwg.mxu0
  %v1872 = vld [vmem:[%s8] sm:$0xf]
  %v1873 = vld [vmem:[%s8 + $0x4] sm:$0xf]
  %v1874 = vld [vmem:[%s8 + $0x8] sm:$0xf]
  %v1875 = vld [vmem:[%s8 + $0xc] sm:$0xf]
  %v1876 = vld [vmem:[%s8 + $0x10] sm:$0xf]
  %v1877 = vld [vmem:[%s8 + $0x14] sm:$0xf]
  %v1878 = vld [vmem:[%s8 + $0x18] sm:$0xf]
  %v1879 = vld [vmem:[%s8 + $0x1c] sm:$0xf]
  %v1880 = vpack.c.bf16 %v1813, %v1810
  %v1881 = vpack.c.bf16 %v1821, %v1818
  %v1882 = vpack.c.bf16 %v1829, %v1826
  %v1883 = vpack.c.bf16 %v1837, %v1834
  %v1884 = vpack.c.bf16 %v1845, %v1842
  %v1885 = vpack.c.bf16 %v1853, %v1850
  %v1886 = vpack.c.bf16 %v1861, %v1858
  %v1887 = vpack.c.bf16 %v1869, %v1866
  %v1896 = vunpack.c.l.b16 %v1872
  %v1897 = vunpack.c.l.b16 %v1873
  %v1898 = vunpack.c.l.b16 %v1874
  %v1899 = vunpack.c.l.b16 %v1875
  %v1900 = vunpack.c.l.b16 %v1876
  %v1901 = vunpack.c.l.b16 %v1877
  %v1902 = vunpack.c.l.b16 %v1878
  %v1903 = vunpack.c.l.b16 %v1879
  %v1904 = vpack.c.b16 %v1897, %v1896
  %v1905 = vpack.c.b16 %v1899, %v1898
  %v1906 = vpack.c.b16 %v1901, %v1900
  %v1907 = vpack.c.b16 %v1903, %v1902
  %1912 = vmatprep.subr.bf16.mxu0 0
  %1913 = vmatpush1.bf16.msra.mxu0 %v1880
  %1914 = vmatprep.subr.bf16.mxu0 0
  %1915 = vmatpush1.bf16.msra.mxu0 %v1881
  %1916 = vmatprep.subr.bf16.mxu0 0
  %1917 = vmatpush1.bf16.msra.mxu0 %v1882
  %1918 = vmatprep.subr.bf16.mxu0 0
  %1919 = vmatpush1.bf16.msra.mxu0 %v1883
  %1920 = vmatprep.subr.bf16.mxu0 0
  %1921 = vmatpush1.bf16.msra.mxu0 %v1884
  %1922 = vmatprep.subr.bf16.mxu0 0
  %1923 = vmatpush1.bf16.msra.mxu0 %v1885
  %1924 = vmatprep.subr.bf16.mxu0 0
  %1925 = vmatpush1.bf16.msra.mxu0 %v1886
  %1926 = vmatprep.subr.bf16.mxu0 0
  %1927 = vmatpush1.bf16.msra.mxu0 %v1887
  %1928 = vmatprep.subr.bf16.mxu0 0
  %1929 = vmatpush1.bf16.msra.mxu0 0
  %1930 = vmatprep.subr.bf16.mxu0 0
  %1931 = vmatpush1.bf16.msra.mxu0 0
  %1932 = vmatprep.subr.bf16.mxu0 0
  %1933 = vmatpush1.bf16.msra.mxu0 0
  %1934 = vmatprep.subr.bf16.mxu0 0
  %1935 = vmatpush1.bf16.msra.mxu0 0
  %1936 = vmatprep.subr.bf16.mxu0 0
  %1937 = vmatpush1.bf16.msra.mxu0 0
  %1938 = vmatprep.subr.bf16.mxu0 0
  %1939 = vmatpush1.bf16.msra.mxu0 0
  %1940 = vmatprep.subr.bf16.mxu0 0
  %1941 = vmatpush1.bf16.msra.mxu0 0
  %1942 = vmatprep.subr.bf16.mxu0 0
  %1943 = vmatpush1.bf16.msra.mxu0 0
  %1944 = vmatprep.mubr.bf16.mxu0 0
  %1945 = vmatmul.mubr.bf16.gmra.mrb[0].mxu0 %v1904
  %v1946 = vpop.f32.mrb[0].mxu0
  %v1947 = vadd.f32 0.0, %v1946
  %v1948 = vpop.f32.mrb[0].mxu0
  %v1949 = vpop.f32.mrb[0].mxu0
  %v1950 = vadd.f32 0.0, %v1949
  %v1951 = vpop.f32.mrb[0].mxu0
  %1952 = vmatprep.mubr.bf16.mxu0 0
  %1953 = vmatmul.mubr.bf16.gmra.mrb[0].mxu0 %v1905
  %v1954 = vpop.f32.mrb[0].mxu0
  %v1955 = vadd.f32 0.0, %v1954
  %v1956 = vpop.f32.mrb[0].mxu0
  %v1957 = vpop.f32.mrb[0].mxu0
  %v1958 = vadd.f32 0.0, %v1957
  %v1959 = vpop.f32.mrb[0].mxu0
  %1960 = vmatprep.mubr.bf16.mxu0 0
  %1961 = vmatmul.mubr.bf16.gmra.mrb[0].mxu0 %v1906
  %v1962 = vpop.f32.mrb[0].mxu0
  %v1963 = vadd.f32 0.0, %v1962
  %v1964 = vpop.f32.mrb[0].mxu0
  %v1965 = vpop.f32.mrb[0].mxu0
  %v1966 = vadd.f32 0.0, %v1965
  %v1967 = vpop.f32.mrb[0].mxu0
  %1968 = vmatprep.mubr.bf16.mxu0 0
  %1969 = vmatmul.mubr.bf16.gmra.mrb[0].mxu0 %v1907
  %v1970 = vpop.f32.mrb[0].mxu0
  %v1971 = vadd.f32 0.0, %v1970
  %v1972 = vpop.f32.mrb[0].mxu0
  %v1973 = vpop.f32.mrb[0].mxu0
  %v1974 = vadd.f32 0.0, %v1973
  %v1975 = vpop.f32.mrb[0].mxu0
  %1976 = vdwg.mxu0
  %v1977 = vld [vmem:[%s9] sm:$0xff]
  %v1978 = vld [vmem:[%s9 + $0x8] sm:$0xff]
  %v1979 = vld [vmem:[%s9 + $0x10] sm:$0xff]
  %v1980 = vld [vmem:[%s9 + $0x18] sm:$0xff]
  %v1981 = vld [vmem:[%s9 + $0x20] sm:$0xff]
  %v1982 = vld [vmem:[%s9 + $0x28] sm:$0xff]
  %v1983 = vld [vmem:[%s9 + $0x30] sm:$0xff]
  %v1984 = vld [vmem:[%s9 + $0x38] sm:$0xff]
  %1986 = vset.pattern.permute.xlu0 0
  %1987 = vperm.xlu0 %1986, %v1977
  %v1988 = vpop.permute.xlu0 %1987
  %1991 = vset.pattern.permute.xlu0 0
  %1992 = vperm.xlu0 %1991, %v1978
  %v1993 = vpop.permute.xlu0 %1992
  %1996 = vset.pattern.permute.xlu0 0
  %1997 = vperm.xlu0 %1996, %v1979
  %v1998 = vpop.permute.xlu0 %1997
  %2001 = vset.pattern.permute.xlu0 0
  %2002 = vperm.xlu0 %2001, %v1980
  %v2003 = vpop.permute.xlu0 %2002
  %2006 = vset.pattern.permute.xlu0 0
  %2007 = vperm.xlu0 %2006, %v1981
  %v2008 = vpop.permute.xlu0 %2007
  %2011 = vset.pattern.permute.xlu0 0
  %2012 = vperm.xlu0 %2011, %v1982
  %v2013 = vpop.permute.xlu0 %2012
  %2016 = vset.pattern.permute.xlu0 0
  %2017 = vperm.xlu0 %2016, %v1983
  %v2018 = vpop.permute.xlu0 %2017
  %2021 = vset.pattern.permute.xlu0 0
  %2022 = vperm.xlu0 %2021, %v1984
  %v2023 = vpop.permute.xlu0 %2022
  %v2025 = vmul.f32 %v1947, %v1988
  %v2026 = vmul.f32 %v1950, %v1993
  %v2027 = vmul.f32 %v1955, %v1998
  %v2028 = vmul.f32 %v1958, %v2003
  %v2029 = vmul.f32 %v1963, %v2008
  %v2030 = vmul.f32 %v1966, %v2013
  %v2031 = vmul.f32 %v1971, %v2018
  %v2032 = vmul.f32 %v1974, %v2023
  %v2033 = vld [vmem:[%s14] sm:$0xff]
  %v2034 = vld [vmem:[%s14 + $0x8] sm:$0xff]
  %v2035 = vld [vmem:[%s14 + $0x10] sm:$0xff]
  %v2036 = vld [vmem:[%s14 + $0x18] sm:$0xff]
  %v2037 = vld [vmem:[%s14 + $0x20] sm:$0xff]
  %v2038 = vld [vmem:[%s14 + $0x28] sm:$0xff]
  %v2039 = vld [vmem:[%s14 + $0x30] sm:$0xff]
  %v2040 = vld [vmem:[%s14 + $0x38] sm:$0xff]
  %v2041 = vadd.f32 %v2025, %v2033
  %v2042 = vadd.f32 %v2026, %v2034
  %v2043 = vadd.f32 %v2027, %v2035
  %v2044 = vadd.f32 %v2028, %v2036
  %v2045 = vadd.f32 %v2029, %v2037
  %v2046 = vadd.f32 %v2030, %v2038
  %v2047 = vadd.f32 %v2031, %v2039
  %v2048 = vadd.f32 %v2032, %v2040
  %v2049 = vadd.f32 %v2041, %v2042
  %v2050 = vadd.f32 %v2049, %v2043
  %v2051 = vadd.f32 %v2050, %v2044
  %v2052 = vadd.f32 %v2051, %v2045
  %v2053 = vadd.f32 %v2052, %v2046
  %v2054 = vadd.f32 %v2053, %v2047
  %v2055 = vadd.f32 %v2054, %v2048
  %v2056 = vrot.slane %v2055, 4
  %v2057 = vadd.f32 %v2055, %v2056
  %v2058 = vrot.slane %v2057, 2
  %v2059 = vadd.f32 %v2057, %v2058
  %v2060 = vrot.slane %v2059, 1
  %v2061 = vadd.f32 %v2059, %v2060
  %v2062 = vrcp.pop 64.0
  %v2063 = vmul.f32 %v2061, %v2062
  %v2064 = vsub.f32 %v2041, %v2063
  %v2065 = vsub.f32 %v2042, %v2063
  %v2066 = vsub.f32 %v2043, %v2063
  %v2067 = vsub.f32 %v2044, %v2063
  %v2068 = vsub.f32 %v2045, %v2063
  %v2069 = vsub.f32 %v2046, %v2063
  %v2070 = vsub.f32 %v2047, %v2063
  %v2071 = vsub.f32 %v2048, %v2063
  %v2072 = vmul.f32 %v2064, %v2064
  %v2073 = vmul.f32 %v2065, %v2065
  %v2074 = vmul.f32 %v2066, %v2066
  %v2075 = vmul.f32 %v2067, %v2067
  %v2076 = vmul.f32 %v2068, %v2068
  %v2077 = vmul.f32 %v2069, %v2069
  %v2078 = vmul.f32 %v2070, %v2070
  %v2079 = vmul.f32 %v2071, %v2071
  %v2080 = vadd.f32 %v2072, %v2073
  %v2081 = vadd.f32 %v2080, %v2074
  %v2082 = vadd.f32 %v2081, %v2075
  %v2083 = vadd.f32 %v2082, %v2076
  %v2084 = vadd.f32 %v2083, %v2077
  %v2085 = vadd.f32 %v2084, %v2078
  %v2086 = vadd.f32 %v2085, %v2079
  %v2087 = vrot.slane %v2086, 4
  %v2088 = vadd.f32 %v2086, %v2087
  %v2089 = vrot.slane %v2088, 2
  %v2090 = vadd.f32 %v2088, %v2089
  %v2091 = vrot.slane %v2090, 1
  %v2092 = vadd.f32 %v2090, %v2091
  %v2093 = vmul.f32 %v2092, %v2062
  %v2094 = vadd.f32 %v2093, 1e-05
  %v2095 = vrsqrt.pop %v2094
  %v2096 = vmul.f32 %v2064, %v2095
  %v2097 = vmul.f32 %v2065, %v2095
  %v2098 = vmul.f32 %v2066, %v2095
  %v2099 = vmul.f32 %v2067, %v2095
  %v2100 = vmul.f32 %v2068, %v2095
  %v2101 = vmul.f32 %v2069, %v2095
  %v2102 = vmul.f32 %v2070, %v2095
  %v2103 = vmul.f32 %v2071, %v2095
  %v2104 = vld [vmem:[%s15] sm:$0x1]
  %v2106 = vlaneseq
  %v2107 = vshrl.u32 %v2106, 7
  %v2108 = vsub.s32 0, %v2107
  %v2109 = vrot.slane %v2104, %v2108
  %v2111 = vmul.f32 %v2096, %v2109
  %v2112 = vmul.f32 %v2097, %v2109
  %v2113 = vmul.f32 %v2098, %v2109
  %v2114 = vmul.f32 %v2099, %v2109
  %v2115 = vmul.f32 %v2100, %v2109
  %v2116 = vmul.f32 %v2101, %v2109
  %v2117 = vmul.f32 %v2102, %v2109
  %v2118 = vmul.f32 %v2103, %v2109
  %v2119 = vld [vmem:[%s16] sm:$0x1]
  %v2121 = vlaneseq
  %v2122 = vshrl.u32 %v2121, 7
  %v2123 = vsub.s32 0, %v2122
  %v2124 = vrot.slane %v2119, %v2123
  %v2126 = vadd.f32 %v2111, %v2124
  %v2127 = vadd.f32 %v2112, %v2124
  %v2128 = vadd.f32 %v2113, %v2124
  %v2129 = vadd.f32 %v2114, %v2124
  %v2130 = vadd.f32 %v2115, %v2124
  %v2131 = vadd.f32 %v2116, %v2124
  %v2132 = vadd.f32 %v2117, %v2124
  %v2133 = vadd.f32 %v2118, %v2124
  %2134 = vst [vmem:[%s17] sm:$0xff] %v2126
  %2135 = vst [vmem:[%s17 + $0x8] sm:$0xff] %v2127
  %2136 = vst [vmem:[%s17 + $0x10] sm:$0xff] %v2128
  %2137 = vst [vmem:[%s17 + $0x18] sm:$0xff] %v2129
  %2138 = vst [vmem:[%s17 + $0x20] sm:$0xff] %v2130
  %2139 = vst [vmem:[%s17 + $0x28] sm:$0xff] %v2131
  %2140 = vst [vmem:[%s17 + $0x30] sm:$0xff] %v2132
  %2141 = vst [vmem:[%s17 + $0x38] sm:$0xff] %v2133
  // Predicated region
  $region70: #{time_equiv_conv_forward.1} parent=0 // pred_check
    _
  $region71: #{time_equiv_conv_forward.1} parent=0 // pred_check_branch
    %2143 = sbr.rel (0) target = $region73
  $region72: #{time_equiv_conv_forward.1} parent=0 // pred_region
    _
  $region73: #{time_equiv_conv_forward.1} parent=0 // pred_fallthru
    _
  // Predicated region
  $region74: #{time_equiv_conv_forward.1} parent=0 // pred_check
    _
  $region75: #{time_equiv_conv_forward.1} parent=0 // pred_check_branch
    %2145 = sbr.rel (0) target = $region77
  $region76: #{time_equiv_conv_forward.1} parent=0 // pred_region
    _
  $region77: #{time_equiv_conv_forward.1} parent=0 // pred_fallthru
    _

</llo_original>
